<compile_context>
chip_gen: v7x
topology: tpu7x:2x2x1
jax: 0.10.0
libtpu: 0.0.40
codegen_flags: <defaults>
</compile_context>

<pallas_src>
import jax
import jax.numpy as jnp
from jax.experimental import pallas as pl
from jax.experimental.pallas import tpu as pltpu

_EPS = 1e-5
_INV_SQRT2 = 0.7071067811865476
_VMEM_LIMIT = 64 * 1024 * 1024   # fits v5e/v6e (128 MiB) and v7x (64 MiB/TC);
                                 # tile sizes below keep actual usage well under.


def _round_up(v, m):
    return (v + m - 1) // m * m


def _pick_l_tile(L, max_tile=512):
    """Largest multiple-of-8 divisor of L that is <= max_tile (else full L)."""
    if L % 8 != 0:
        return L
    hi = min(L, max_tile) // 8 * 8
    for t in range(hi, 0, -8):
        if L % t == 0:
            return t
    return L


# ----------------------------- kernels --------------------------------------

def _bn_stats_kernel(x_ref, sums_ref):
    """Per-batch partial per-channel sum / sum-of-squares over the L tiles."""
    @pl.when(pl.program_id(1) == 0)
    def _init():
        sums_ref[...] = jnp.zeros_like(sums_ref)

    x = x_ref[0]                                           # (TL, C_pad) f32
    s1 = jnp.sum(x, axis=0, keepdims=True)                 # (1, C_pad)
    s2 = jnp.sum(x * x, axis=0, keepdims=True)
    sums_ref[0] += jnp.concatenate([s1, s2], axis=0)       # (2, C_pad)


def _dense_layer_kernel(x_ref, xprev_ref, xnext_ref, scale_ref, shift_ref,
                        w_ref, b_ref, out_ref, stats_ref):
    """BN (folded scale/shift) + exact GELU + 3-tap conv + in-kernel concat.

    Passthrough lanes [0, c) come straight from the input tile; the growth
    slab (the 128-aligned lane group(s) covering [c, c+g)) gets conv + bias
    added on top of whatever passthrough lanes fall inside it (the weight /
    bias are zero outside the new channels).  Per-batch partial BatchNorm
    statistics of the produced activation are accumulated into a second
    output so the next layer needs no separate HBM stats pass.
    """
    j = pl.program_id(1)
    num_l = pl.num_programs(1)

    tl = x_ref.shape[1]
    c_in_pad = x_ref.shape[2]
    c_out_pad = out_ref.shape[2]
    slab_w = b_ref.shape[1]
    g_lo = c_out_pad - slab_w          # 128-aligned start of the growth slab

    scale = scale_ref[...]             # (1, c_in_pad)
    shift = shift_ref[...]

    def norm_gelu(v):
        vn = v * scale + shift
        return 0.5 * vn * (1.0 + jax.lax.erf(vn * _INV_SQRT2))

    x = x_ref[0]                       # (tl, c_in_pad) f32
    y = norm_gelu(x)

    # Halo rows (post BN+GELU); zeroed at sequence ends (= conv zero padding).
    y_prev_row = jnp.where(j == 0, 0.0, norm_gelu(xprev_ref[0][-1:, :]))
    y_next_row = jnp.where(j == num_l - 1, 0.0, norm_gelu(xnext_ref[0][:1, :]))

    row = jax.lax.broadcasted_iota(jnp.int32, (tl, 1), 0)
    y_m1 = jnp.where(row == 0, y_prev_row, pltpu.roll(y, shift=1, axis=0))
    y_p1 = jnp.where(row == tl - 1, y_next_row,
                     pltpu.roll(y, shift=tl - 1, axis=0))

    # 3-tap conv as three accumulated bf16 MXU matmuls (f32 accumulation),
    # against a weight trimmed to the active channels / growth slab.
    conv = jnp.dot(y_m1.astype(jnp.bfloat16), w_ref[0],
                   preferred_element_type=jnp.float32)
    conv += jnp.dot(y.astype(jnp.bfloat16), w_ref[1],
                    preferred_element_type=jnp.float32)
    conv += jnp.dot(y_p1.astype(jnp.bfloat16), w_ref[2],
                    preferred_element_type=jnp.float32)

    # Growth slab = conv + bias + whatever passthrough lanes fall inside it.
    slab = conv + b_ref[...]
    pass_w = c_in_pad - g_lo           # 0 or 128 (both 128-aligned)
    if pass_w > 0:
        x_slab = x[:, g_lo:]
        if pass_w < slab_w:
            x_slab = jnp.concatenate(
                [x_slab, jnp.zeros((tl, slab_w - pass_w), x_slab.dtype)],
                axis=-1)
        slab = slab + x_slab

    if g_lo > 0:
        out_tile = jnp.concatenate([x[:, :g_lo], slab], axis=-1)
    else:
        out_tile = slab
    out_ref[0] = out_tile.astype(out_ref.dtype)

    # Fused BN statistics of the freshly produced activation (per-batch
    # partials; reduced over N in the wrapper).
    @pl.when(j == 0)
    def _init():
        stats_ref[...] = jnp.zeros_like(stats_ref)

    s1 = jnp.sum(out_tile, axis=0, keepdims=True)
    s2 = jnp.sum(out_tile * out_tile, axis=0, keepdims=True)
    stats_ref[0] += jnp.concatenate([s1, s2], axis=0)


# --------------------------- pallas wrappers ---------------------------------

def _bn_stats_pallas(x_buf, tl):
    n, L, c_pad = x_buf.shape
    return pl.pallas_call(
        _bn_stats_kernel,
        out_shape=jax.ShapeDtypeStruct((n, 2, c_pad), jnp.float32),
        grid_spec=pltpu.PrefetchScalarGridSpec(
            num_scalar_prefetch=0,
            grid=(n, L // tl),
            in_specs=[pl.BlockSpec((1, tl, c_pad), lambda i, j: (i, j, 0))],
            out_specs=pl.BlockSpec((1, 2, c_pad), lambda i, j: (i, 0, 0)),
        ),
        compiler_params=pltpu.CompilerParams(
            dimension_semantics=("parallel", "arbitrary"),
            vmem_limit_bytes=_VMEM_LIMIT,
        ),
    )(x_buf)


def _dense_layer_pallas(x_buf, scale, shift, w3, b_slab, tl, c_out_pad, slab_w):
    n, L, c_in_pad = x_buf.shape
    num_l = L // tl

    if L % 8 == 0 and tl % 8 == 0:
        hb = 8
        tlb = tl // 8
        nb = L // 8
        prev_map = lambda i, j: (i, jnp.maximum(j * tlb - 1, 0), 0)
        next_map = lambda i, j: (i, jnp.minimum((j + 1) * tlb, nb - 1), 0)
    else:  # single L tile fallback (halo contents are masked out anyway)
        hb = L
        prev_map = lambda i, j: (i, 0, 0)
        next_map = lambda i, j: (i, 0, 0)

    return pl.pallas_call(
        _dense_layer_kernel,
        out_shape=(
            jax.ShapeDtypeStruct((n, L, c_out_pad), jnp.float32),   # activation
            jax.ShapeDtypeStruct((n, 2, c_out_pad), jnp.float32),   # BN partials
        ),
        grid_spec=pltpu.PrefetchScalarGridSpec(
            num_scalar_prefetch=0,
            grid=(n, num_l),
            in_specs=[
                pl.BlockSpec((1, tl, c_in_pad), lambda i, j: (i, j, 0)),
                pl.BlockSpec((1, hb, c_in_pad), prev_map),
                pl.BlockSpec((1, hb, c_in_pad), next_map),
                pl.BlockSpec((1, c_in_pad), lambda i, j: (0, 0)),         # scale
                pl.BlockSpec((1, c_in_pad), lambda i, j: (0, 0)),         # shift
                pl.BlockSpec((3, c_in_pad, slab_w), lambda i, j: (0, 0, 0)),  # W
                pl.BlockSpec((1, slab_w), lambda i, j: (0, 0)),           # bias
            ],
            out_specs=[
                pl.BlockSpec((1, tl, c_out_pad), lambda i, j: (i, j, 0)),
                pl.BlockSpec((1, 2, c_out_pad), lambda i, j: (i, 0, 0)),
            ],
        ),
        compiler_params=pltpu.CompilerParams(
            dimension_semantics=("parallel", "arbitrary"),
            vmem_limit_bytes=_VMEM_LIMIT,
        ),
    )(x_buf, x_buf, x_buf, scale, shift, w3, b_slab)


@jax.jit
def dense_block_pallas(x_ncl, params):
    """DenseBlock forward.  x_ncl: (N, C_in, L) PyTorch layout -> (N, C_out, L)."""
    n, c_in, L = x_ncl.shape
    g_total = sum(int(W.shape[0]) for (_, _, W, _) in params)
    c_final_pad = _round_up(c_in + g_total, 128)
    # 512-row tiles hit ~85% of HBM roofline; drop to 256 when channels get
    # very wide so double-buffered f32 tiles + temps stay inside v7x's VMEM.
    tl = _pick_l_tile(L, max_tile=512 if c_final_pad <= 1024 else 256)

    c = c_in
    c_pad = _round_up(c_in, 128)
    x_nlc = jnp.transpose(x_ncl, (0, 2, 1)).astype(jnp.float32)     # (N, L, C_in)
    x_buf = jnp.zeros((n, L, c_pad), jnp.float32).at[:, :, :c_in].set(x_nlc)

    inv_cnt = 1.0 / float(n * L)

    # Training-mode batch statistics of the FIRST layer's input; later layers
    # get their statistics fused into the producing compute kernel.
    sums = jnp.sum(_bn_stats_pallas(x_buf, tl), axis=0)             # (2, c_pad)

    for (gamma, beta, W, b) in params:
        g = int(W.shape[0])
        c_in_pad = _round_up(c, 128)
        g_lo = (c // 128) * 128                       # start of the growth slab
        c_out_pad = _round_up(c + g, 128)
        slab_w = c_out_pad - g_lo

        # Fold batch stats (biased variance) into per-channel scale/shift.
        mean = sums[0, :c] * inv_cnt
        var = jnp.maximum(sums[1, :c] * inv_cnt - mean * mean, 0.0)
        sc = gamma * jax.lax.rsqrt(var + _EPS)
        sh = beta - mean * sc
        scale = jnp.zeros((1, c_in_pad), jnp.float32).at[0, :c].set(sc)
        shift = jnp.zeros((1, c_in_pad), jnp.float32).at[0, :c].set(sh)

        # Per-tap weights trimmed to the active input channels and the growth
        # slab: non-zero only at [:, :c, c-g_lo : c-g_lo+g].
        w3 = jnp.zeros((3, c_in_pad, slab_w), jnp.float32)
        w3 = w3.at[:, :c, c - g_lo:c - g_lo + g].set(jnp.transpose(W, (2, 1, 0)))
        w3 = w3.astype(jnp.bfloat16)
        b_slab = jnp.zeros((1, slab_w), jnp.float32)
        b_slab = b_slab.at[0, c - g_lo:c - g_lo + g].set(b)

        # One pipelined pass: normalize + GELU + conv + in-kernel concat,
        # plus fused BN partial stats for the next layer.
        x_buf, stats = _dense_layer_pallas(
            x_buf, scale, shift, w3, b_slab, tl, c_out_pad, slab_w)
        sums = jnp.sum(stats, axis=0)
        c += g

    return jnp.transpose(x_buf[:, :, :c], (0, 2, 1))                # (N, C, L)


# ---------------- pure-JAX reference (for verification) ----------------------

def _ref_dense_block(x_ncl, params):
    for (gamma, beta, W, b) in params:
        mean = jnp.mean(x_ncl, axis=(0, 2), keepdims=True)
        var = jnp.mean((x_ncl - mean) ** 2, axis=(0, 2), keepdims=True)
        xn = (x_ncl - mean) / jnp.sqrt(var + _EPS) * gamma[None, :, None] \
            + beta[None, :, None]
        y = 0.5 * xn * (1.0 + jax.scipy.special.erf(xn * _INV_SQRT2))
        out = jax.lax.conv_general_dilated(
            y, W, window_strides=(1,), padding=[(1, 1)],
            dimension_numbers=("NCH", "OIH", "NCH"))
        x_ncl = jnp.concatenate([x_ncl, out + b[None, :, None]], axis=1)
    return x_ncl


def make_params(key, in_channels, num_layers, growth_rate):
    params = []
    c = in_channels
    for _ in range(num_layers):
        key, k1, k2, k3, k4 = jax.random.split(key, 5)
        gamma = 1.0 + 0.1 * jax.random.normal(k1, (c,), jnp.float32)
        beta = 0.1 * jax.random.normal(k2, (c,), jnp.float32)
        bound = (3.0 * c) ** -0.5       # PyTorch Conv1d default init bound
        W = jax.random.uniform(k3, (growth_rate, c, 3), jnp.float32, -bound, bound)
        b = jax.random.uniform(k4, (growth_rate,), jnp.float32, -bound, bound)
        params.append((gamma, beta, W, b))
        c += growth_rate
    return params


if __name__ == "__main__":
    configs = [
        # (N, C_in, L, num_layers, growth_rate)
        (2, 4, 16, 3, 4),      # stays inside one 128-lane channel group
        (2, 120, 16, 2, 16),   # growth channels cross a 128-lane boundary
    ]
    key = jax.random.PRNGKey(0)
    for (N, C_in, L, num_layers, growth_rate) in configs:
        key, kx, kp = jax.random.split(key, 3)
        x = jax.random.normal(kx, (N, C_in, L), jnp.float32)
        params = make_params(kp, C_in, num_layers, growth_rate)

        out = jax.block_until_ready(dense_block_pallas(x, params))
        ref = jax.block_until_ready(_ref_dense_block(x, params))

        c_out = C_in + num_layers * growth_rate
        assert out.shape == (N, c_out, L), out.shape
        max_err = float(jnp.max(jnp.abs(out - ref)))
        # bf16 MXU matmul (f32 accumulation) => slightly looser than pure f32.
        assert jnp.allclose(out, ref, atol=2e-2, rtol=2e-2), max_err
    print("KERNEL_OK")
</pallas_src>

<mosaic_0001>
module attributes {stable_mosaic.version = 11 : i64} {
  func.func @_bn_stats_kernel(%arg0: i32, %arg1: i32, %arg2: memref<1x16x128xf32, #tpu.memory_space<vmem>>, %arg3: memref<1x2x128xf32, #tpu.memory_space<vmem>>) attributes {dimension_semantics = [#tpu.dimension_semantics<parallel>, #tpu.dimension_semantics<arbitrary>], iteration_bounds = array<i64: 2, 1>, scalar_prefetch = 0 : i64, scratch_operands = 0 : i64, tpu.core_type = #tpu.core_type<tc>, window_params = [{transform_indices = @transform_0, window_bounds = array<i64: 1, 16, 128>}, {transform_indices = @transform_1, window_bounds = array<i64: 1, 2, 128>}]} {
    %c0_i32 = arith.constant 0 : i32
    %0 = arith.cmpi eq, %arg1, %c0_i32 : i32
    %1 = arith.extui %0 : i1 to i32
    %c0_i32_0 = arith.constant 0 : i32
    %2 = arith.cmpi ne, %1, %c0_i32_0 : i32
    scf.if %2 {
      %cst_10 = arith.constant 0.000000e+00 : f32
      %17 = vector.broadcast %cst_10 : f32 to vector<1x2x128xf32>
      %c0_11 = arith.constant 0 : index
      %c0_12 = arith.constant 0 : index
      %c0_13 = arith.constant 0 : index
      %18 = vector.load %arg3[%c0_11, %c0_12, %c0_13] : memref<1x2x128xf32, #tpu.memory_space<vmem>>, vector<1x2x128xf32>
      tpu.vector_store %arg3[%c0_11, %c0_12, %c0_13], %17 {strides = array<i32>} : memref<1x2x128xf32, #tpu.memory_space<vmem>>, vector<1x2x128xf32>,
    } else {
    }
    %c0 = arith.constant 0 : index
    %c0_1 = arith.constant 0 : index
    %c0_2 = arith.constant 0 : index
    %3 = vector.load %arg2[%c0, %c0_1, %c0_2] : memref<1x16x128xf32, #tpu.memory_space<vmem>>, vector<1x16x128xf32>
    %4 = vector.shape_cast %3 : vector<1x16x128xf32> to vector<16x128xf32>
    %cst = arith.constant dense<0.000000e+00> : vector<128xf32>
    %5 = vector.multi_reduction <add>, %4, %cst [0] : vector<16x128xf32> to vector<128xf32>
    %6 = vector.shape_cast %5 : vector<128xf32> to vector<1x128xf32>
    %7 = arith.mulf %4, %4 : vector<16x128xf32>
    %cst_3 = arith.constant dense<0.000000e+00> : vector<128xf32>
    %8 = vector.multi_reduction <add>, %7, %cst_3 [0] : vector<16x128xf32> to vector<128xf32>
    %9 = vector.shape_cast %8 : vector<128xf32> to vector<1x128xf32>
    %c0_4 = arith.constant 0 : index
    %c0_5 = arith.constant 0 : index
    %c0_6 = arith.constant 0 : index
    %10 = vector.load %arg3[%c0_4, %c0_5, %c0_6] : memref<1x2x128xf32, #tpu.memory_space<vmem>>, vector<1x2x128xf32>
    %11 = vector.shape_cast %10 : vector<1x2x128xf32> to vector<2x128xf32>
    %12 = tpu.concatenate %6, %9 in 0 : vector<1x128xf32>, vector<1x128xf32> -> vector<2x128xf32>
    %13 = arith.addf %11, %12 : vector<2x128xf32>
    %c0_7 = arith.constant 0 : index
    %c0_8 = arith.constant 0 : index
    %c0_9 = arith.constant 0 : index
    %14 = vector.load %arg3[%c0_7, %c0_8, %c0_9] : memref<1x2x128xf32, #tpu.memory_space<vmem>>, vector<1x2x128xf32>
    %15 = vector.shape_cast %14 : vector<1x2x128xf32> to vector<2x128xf32>
    %16 = vector.shape_cast %13 : vector<2x128xf32> to vector<1x2x128xf32>
    tpu.vector_store %arg3[%c0_7, %c0_8, %c0_9], %16 {strides = array<i32>} : memref<1x2x128xf32, #tpu.memory_space<vmem>>, vector<1x2x128xf32>,
    return
  }
  func.func @transform_0(%arg0: i32, %arg1: i32) -> (i32, i32, i32) {
    %c0_i32 = arith.constant 0 : i32
    %c0_i32_0 = arith.constant 0 : i32
    return %arg0, %arg1, %c0_i32 : i32, i32, i32
  }
  func.func @transform_1(%arg0: i32, %arg1: i32) -> (i32, i32, i32) {
    %c0_i32 = arith.constant 0 : i32
    %c0_i32_0 = arith.constant 0 : i32
    %c0_i32_1 = arith.constant 0 : i32
    return %arg0, %c0_i32, %c0_i32_0 : i32, i32, i32
  }
}

module attributes {stable_mosaic.version = 11 : i64} {
  func.func @_dense_layer_kernel(%arg0: i32, %arg1: i32, %arg2: memref<1x16x128xf32, #tpu.memory_space<vmem>>, %arg3: memref<1x8x128xf32, #tpu.memory_space<vmem>>, %arg4: memref<1x8x128xf32, #tpu.memory_space<vmem>>, %arg5: memref<1x128xf32, #tpu.memory_space<vmem>>, %arg6: memref<1x128xf32, #tpu.memory_space<vmem>>, %arg7: memref<3x128x128xbf16, #tpu.memory_space<vmem>>, %arg8: memref<1x128xf32, #tpu.memory_space<vmem>>, %arg9: memref<1x16x128xf32, #tpu.memory_space<vmem>>, %arg10: memref<1x2x128xf32, #tpu.memory_space<vmem>>) attributes {dimension_semantics = [#tpu.dimension_semantics<parallel>, #tpu.dimension_semantics<arbitrary>], iteration_bounds = array<i64: 2, 1>, scalar_prefetch = 0 : i64, scratch_operands = 0 : i64, tpu.core_type = #tpu.core_type<tc>, window_params = [{transform_indices = @transform_0, window_bounds = array<i64: 1, 16, 128>}, {transform_indices = @transform_1, window_bounds = array<i64: 1, 8, 128>}, {transform_indices = @transform_2, window_bounds = array<i64: 1, 8, 128>}, {pipeline_mode = #tpu.pipeline_mode<synchronous>, transform_indices = @transform_3, window_bounds = array<i64: 1, 128>}, {pipeline_mode = #tpu.pipeline_mode<synchronous>, transform_indices = @transform_4, window_bounds = array<i64: 1, 128>}, {pipeline_mode = #tpu.pipeline_mode<synchronous>, transform_indices = @transform_5, window_bounds = array<i64: 3, 128, 128>}, {pipeline_mode = #tpu.pipeline_mode<synchronous>, transform_indices = @transform_6, window_bounds = array<i64: 1, 128>}, {transform_indices = @transform_7, window_bounds = array<i64: 1, 16, 128>}, {transform_indices = @transform_8, window_bounds = array<i64: 1, 2, 128>}]} {
    %c0 = arith.constant 0 : index
    %c0_0 = arith.constant 0 : index
    %0 = vector.load %arg5[%c0, %c0_0] : memref<1x128xf32, #tpu.memory_space<vmem>>, vector<1x128xf32>
    %c0_1 = arith.constant 0 : index
    %c0_2 = arith.constant 0 : index
    %1 = vector.load %arg6[%c0_1, %c0_2] : memref<1x128xf32, #tpu.memory_space<vmem>>, vector<1x128xf32>
    %c0_3 = arith.constant 0 : index
    %c0_4 = arith.constant 0 : index
    %c0_5 = arith.constant 0 : index
    %2 = vector.load %arg2[%c0_3, %c0_4, %c0_5] : memref<1x16x128xf32, #tpu.memory_space<vmem>>, vector<1x16x128xf32>
    %3 = vector.shape_cast %2 : vector<1x16x128xf32> to vector<16x128xf32>
    %4 = vector.broadcast %0 : vector<1x128xf32> to vector<16x128xf32>
    %5 = arith.mulf %3, %4 : vector<16x128xf32>
    %6 = vector.broadcast %1 : vector<1x128xf32> to vector<16x128xf32>
    %7 = arith.addf %5, %6 : vector<16x128xf32>
    %cst = arith.constant 5.000000e-01 : f32
    %8 = vector.broadcast %cst : f32 to vector<16x128xf32>
    %9 = arith.mulf %8, %7 : vector<16x128xf32>
    %cst_6 = arith.constant 0.707106769 : f32
    %10 = vector.broadcast %cst_6 : f32 to vector<16x128xf32>
    %11 = arith.mulf %7, %10 : vector<16x128xf32>
    %12 = math.erf %11 : vector<16x128xf32>
    %cst_7 = arith.constant 1.000000e+00 : f32
    %13 = vector.broadcast %cst_7 : f32 to vector<16x128xf32>
    %14 = arith.addf %13, %12 : vector<16x128xf32>
    %15 = arith.mulf %9, %14 : vector<16x128xf32>
    %c0_i32 = arith.constant 0 : i32
    %16 = arith.cmpi eq, %arg1, %c0_i32 : i32
    %c0_8 = arith.constant 0 : index
    %c0_9 = arith.constant 0 : index
    %c0_10 = arith.constant 0 : index
    %17 = vector.load %arg3[%c0_8, %c0_9, %c0_10] : memref<1x8x128xf32, #tpu.memory_space<vmem>>, vector<1x8x128xf32>
    %18 = vector.shape_cast %17 : vector<1x8x128xf32> to vector<8x128xf32>
    %19 = vector.extract_strided_slice %18 {offsets = [7, 0], sizes = [1, 128], strides = [1, 1]} : vector<8x128xf32> to vector<1x128xf32>
    %20 = arith.mulf %19, %0 : vector<1x128xf32>
    %21 = arith.addf %20, %1 : vector<1x128xf32>
    %cst_11 = arith.constant 5.000000e-01 : f32
    %22 = vector.broadcast %cst_11 : f32 to vector<1x128xf32>
    %23 = arith.mulf %22, %21 : vector<1x128xf32>
    %cst_12 = arith.constant 0.707106769 : f32
    %24 = vector.broadcast %cst_12 : f32 to vector<1x128xf32>
    %25 = arith.mulf %21, %24 : vector<1x128xf32>
    %26 = math.erf %25 : vector<1x128xf32>
    %cst_13 = arith.constant 1.000000e+00 : f32
    %27 = vector.broadcast %cst_13 : f32 to vector<1x128xf32>
    %28 = arith.addf %27, %26 : vector<1x128xf32>
    %29 = arith.mulf %23, %28 : vector<1x128xf32>
    %cst_14 = arith.constant 0.000000e+00 : f32
    %30 = vector.broadcast %cst_14 : f32 to vector<1x128xf32>
    %31 = arith.select %16, %30, %29 : vector<1x128xf32>
    %c0_i32_15 = arith.constant 0 : i32
    %32 = arith.cmpi eq, %arg1, %c0_i32_15 : i32
    %c0_16 = arith.constant 0 : index
    %c0_17 = arith.constant 0 : index
    %c0_18 = arith.constant 0 : index
    %33 = vector.load %arg4[%c0_16, %c0_17, %c0_18] : memref<1x8x128xf32, #tpu.memory_space<vmem>>, vector<1x8x128xf32>
    %34 = vector.shape_cast %33 : vector<1x8x128xf32> to vector<8x128xf32>
    %35 = vector.extract_strided_slice %34 {offsets = [0, 0], sizes = [1, 128], strides = [1, 1]} : vector<8x128xf32> to vector<1x128xf32>
    %36 = arith.mulf %35, %0 : vector<1x128xf32>
    %37 = arith.addf %36, %1 : vector<1x128xf32>
    %cst_19 = arith.constant 5.000000e-01 : f32
    %38 = vector.broadcast %cst_19 : f32 to vector<1x128xf32>
    %39 = arith.mulf %38, %37 : vector<1x128xf32>
    %cst_20 = arith.constant 0.707106769 : f32
    %40 = vector.broadcast %cst_20 : f32 to vector<1x128xf32>
    %41 = arith.mulf %37, %40 : vector<1x128xf32>
    %42 = math.erf %41 : vector<1x128xf32>
    %cst_21 = arith.constant 1.000000e+00 : f32
    %43 = vector.broadcast %cst_21 : f32 to vector<1x128xf32>
    %44 = arith.addf %43, %42 : vector<1x128xf32>
    %45 = arith.mulf %39, %44 : vector<1x128xf32>
    %cst_22 = arith.constant 0.000000e+00 : f32
    %46 = vector.broadcast %cst_22 : f32 to vector<1x128xf32>
    %47 = arith.select %32, %46, %45 : vector<1x128xf32>
    %48 = tpu.iota {dimensions = array<i32: 0>} : vector<16x1xi32>
    %c0_i32_23 = arith.constant 0 : i32
    %49 = vector.broadcast %c0_i32_23 : i32 to vector<16x1xi32>
    %50 = arith.cmpi eq, %48, %49 : vector<16x1xi32>
    %c1_i32 = arith.constant 1 : i32
    %51 = tpu.dynamic_rotate %15 by %c1_i32 dim 0 : vector<16x128xf32>, i32 -> vector<16x128xf32>
    %52 = vector.shape_cast %50 : vector<16x1xi1> to vector<16x1xi1>
    %53 = vector.broadcast %52 : vector<16x1xi1> to vector<16x128xi1>
    %54 = vector.shape_cast %31 : vector<1x128xf32> to vector<1x128xf32>
    %55 = vector.broadcast %54 : vector<1x128xf32> to vector<16x128xf32>
    %56 = arith.select %53, %55, %51 : vector<16x128xi1>, vector<16x128xf32>
    %c15_i32 = arith.constant 15 : i32
    %57 = vector.broadcast %c15_i32 : i32 to vector<16x1xi32>
    %58 = arith.cmpi eq, %48, %57 : vector<16x1xi32>
    %c15_i32_24 = arith.constant 15 : i32
    %59 = tpu.dynamic_rotate %15 by %c15_i32_24 dim 0 : vector<16x128xf32>, i32 -> vector<16x128xf32>
    %60 = vector.shape_cast %58 : vector<16x1xi1> to vector<16x1xi1>
    %61 = vector.broadcast %60 : vector<16x1xi1> to vector<16x128xi1>
    %62 = vector.shape_cast %47 : vector<1x128xf32> to vector<1x128xf32>
    %63 = vector.broadcast %62 : vector<1x128xf32> to vector<16x128xf32>
    %64 = arith.select %61, %63, %59 : vector<16x128xi1>, vector<16x128xf32>
    %65 = arith.truncf %56 : vector<16x128xf32> to vector<16x128xbf16>
    %c0_25 = arith.constant 0 : index
    %c0_26 = arith.constant 0 : index
    %c0_27 = arith.constant 0 : index
    %66 = vector.load %arg7[%c0_25, %c0_26, %c0_27] : memref<3x128x128xbf16, #tpu.memory_space<vmem>>, vector<1x128x128xbf16>
    %67 = vector.shape_cast %66 : vector<1x128x128xbf16> to vector<128x128xbf16>
    %cst_28 = arith.constant dense<0.000000e+00> : vector<16x128xf32>
    %68 = tpu.matmul %65, %67, %cst_28 {dimension_numbers = #tpu.dot_dimension_numbers<[1], [0], [0], [1], [0, 0, 1, 1], [], []>} : vector<16x128xbf16>, vector<128x128xbf16>, vector<16x128xf32> -> vector<16x128xf32>
    %69 = arith.truncf %15 : vector<16x128xf32> to vector<16x128xbf16>
    %c1 = arith.constant 1 : index
    %c0_29 = arith.constant 0 : index
    %c0_30 = arith.constant 0 : index
    %70 = vector.load %arg7[%c1, %c0_29, %c0_30] : memref<3x128x128xbf16, #tpu.memory_space<vmem>>, vector<1x128x128xbf16>
    %71 = vector.shape_cast %70 : vector<1x128x128xbf16> to vector<128x128xbf16>
    %cst_31 = arith.constant dense<0.000000e+00> : vector<16x128xf32>
    %72 = tpu.matmul %69, %71, %cst_31 {dimension_numbers = #tpu.dot_dimension_numbers<[1], [0], [0], [1], [0, 0, 1, 1], [], []>} : vector<16x128xbf16>, vector<128x128xbf16>, vector<16x128xf32> -> vector<16x128xf32>
    %73 = arith.addf %68, %72 : vector<16x128xf32>
    %74 = arith.truncf %64 : vector<16x128xf32> to vector<16x128xbf16>
    %c2 = arith.constant 2 : index
    %c0_32 = arith.constant 0 : index
    %c0_33 = arith.constant 0 : index
    %75 = vector.load %arg7[%c2, %c0_32, %c0_33] : memref<3x128x128xbf16, #tpu.memory_space<vmem>>, vector<1x128x128xbf16>
    %76 = vector.shape_cast %75 : vector<1x128x128xbf16> to vector<128x128xbf16>
    %cst_34 = arith.constant dense<0.000000e+00> : vector<16x128xf32>
    %77 = tpu.matmul %74, %76, %cst_34 {dimension_numbers = #tpu.dot_dimension_numbers<[1], [0], [0], [1], [0, 0, 1, 1], [], []>} : vector<16x128xbf16>, vector<128x128xbf16>, vector<16x128xf32> -> vector<16x128xf32>
    %78 = arith.addf %73, %77 : vector<16x128xf32>
    %c0_35 = arith.constant 0 : index
    %c0_36 = arith.constant 0 : index
    %79 = vector.load %arg8[%c0_35, %c0_36] : memref<1x128xf32, #tpu.memory_space<vmem>>, vector<1x128xf32>
    %80 = vector.broadcast %79 : vector<1x128xf32> to vector<16x128xf32>
    %81 = arith.addf %78, %80 : vector<16x128xf32>
    %82 = arith.addf %81, %3 : vector<16x128xf32>
    %c0_37 = arith.constant 0 : index
    %c0_38 = arith.constant 0 : index
    %c0_39 = arith.constant 0 : index
    %83 = vector.load %arg9[%c0_37, %c0_38, %c0_39] : memref<1x16x128xf32, #tpu.memory_space<vmem>>, vector<1x16x128xf32>
    %84 = vector.shape_cast %83 : vector<1x16x128xf32> to vector<16x128xf32>
    %85 = vector.shape_cast %82 : vector<16x128xf32> to vector<1x16x128xf32>
    tpu.vector_store %arg9[%c0_37, %c0_38, %c0_39], %85 {strides = array<i32>} : memref<1x16x128xf32, #tpu.memory_space<vmem>>, vector<1x16x128xf32>,
    %c0_i32_40 = arith.constant 0 : i32
    %86 = arith.cmpi eq, %arg1, %c0_i32_40 : i32
    %87 = arith.extui %86 : i1 to i32
    %c0_i32_41 = arith.constant 0 : i32
    %88 = arith.cmpi ne, %87, %c0_i32_41 : i32
    scf.if %88 {
      %cst_50 = arith.constant 0.000000e+00 : f32
      %101 = vector.broadcast %cst_50 : f32 to vector<1x2x128xf32>
      %c0_51 = arith.constant 0 : index
      %c0_52 = arith.constant 0 : index
      %c0_53 = arith.constant 0 : index
      %102 = vector.load %arg10[%c0_51, %c0_52, %c0_53] : memref<1x2x128xf32, #tpu.memory_space<vmem>>, vector<1x2x128xf32>
      tpu.vector_store %arg10[%c0_51, %c0_52, %c0_53], %101 {strides = array<i32>} : memref<1x2x128xf32, #tpu.memory_space<vmem>>, vector<1x2x128xf32>,
    } else {
    }
    %cst_42 = arith.constant dense<0.000000e+00> : vector<128xf32>
    %89 = vector.multi_reduction <add>, %82, %cst_42 [0] : vector<16x128xf32> to vector<128xf32>
    %90 = vector.shape_cast %89 : vector<128xf32> to vector<1x128xf32>
    %91 = arith.mulf %82, %82 : vector<16x128xf32>
    %cst_43 = arith.constant dense<0.000000e+00> : vector<128xf32>
    %92 = vector.multi_reduction <add>, %91, %cst_43 [0] : vector<16x128xf32> to vector<128xf32>
    %93 = vector.shape_cast %92 : vector<128xf32> to vector<1x128xf32>
    %c0_44 = arith.constant 0 : index
    %c0_45 = arith.constant 0 : index
    %c0_46 = arith.constant 0 : index
    %94 = vector.load %arg10[%c0_44, %c0_45, %c0_46] : memref<1x2x128xf32, #tpu.memory_space<vmem>>, vector<1x2x128xf32>
    %95 = vector.shape_cast %94 : vector<1x2x128xf32> to vector<2x128xf32>
    %96 = tpu.concatenate %90, %93 in 0 : vector<1x128xf32>, vector<1x128xf32> -> vector<2x128xf32>
    %97 = arith.addf %95, %96 : vector<2x128xf32>
    %c0_47 = arith.constant 0 : index
    %c0_48 = arith.constant 0 : index
    %c0_49 = arith.constant 0 : index
    %98 = vector.load %arg10[%c0_47, %c0_48, %c0_49] : memref<1x2x128xf32, #tpu.memory_space<vmem>>, vector<1x2x128xf32>
    %99 = vector.shape_cast %98 : vector<1x2x128xf32> to vector<2x128xf32>
    %100 = vector.shape_cast %97 : vector<2x128xf32> to vector<1x2x128xf32>
    tpu.vector_store %arg10[%c0_47, %c0_48, %c0_49], %100 {strides = array<i32>} : memref<1x2x128xf32, #tpu.memory_space<vmem>>, vector<1x2x128xf32>,
    return
  }
  func.func @transform_0(%arg0: i32, %arg1: i32) -> (i32, i32, i32) {
    %c0_i32 = arith.constant 0 : i32
    %c0_i32_0 = arith.constant 0 : i32
    return %arg0, %arg1, %c0_i32 : i32, i32, i32
  }
  func.func @transform_1(%arg0: i32, %arg1: i32) -> (i32, i32, i32) {
    %c2_i32 = arith.constant 2 : i32
    %0 = arith.muli %arg1, %c2_i32 : i32
    %c1_i32 = arith.constant 1 : i32
    %1 = arith.subi %0, %c1_i32 : i32
    %c0_i32 = arith.constant 0 : i32
    %2 = arith.maxsi %1, %c0_i32 : i32
    %c0_i32_0 = arith.constant 0 : i32
    %c0_i32_1 = arith.constant 0 : i32
    return %arg0, %2, %c0_i32_0 : i32, i32, i32
  }
  func.func @transform_2(%arg0: i32, %arg1: i32) -> (i32, i32, i32) {
    %c1_i32 = arith.constant 1 : i32
    %0 = arith.addi %arg1, %c1_i32 : i32
    %c2_i32 = arith.constant 2 : i32
    %1 = arith.muli %0, %c2_i32 : i32
    %c1_i32_0 = arith.constant 1 : i32
    %2 = arith.minsi %1, %c1_i32_0 : i32
    %c0_i32 = arith.constant 0 : i32
    %c0_i32_1 = arith.constant 0 : i32
    return %arg0, %2, %c0_i32 : i32, i32, i32
  }
  func.func @transform_3(%arg0: i32, %arg1: i32) -> (i32, i32) {
    %c0_i32 = arith.constant 0 : i32
    %c0_i32_0 = arith.constant 0 : i32
    %c0_i32_1 = arith.constant 0 : i32
    return %c0_i32, %c0_i32_0 : i32, i32
  }
  func.func @transform_4(%arg0: i32, %arg1: i32) -> (i32, i32) {
    %c0_i32 = arith.constant 0 : i32
    %c0_i32_0 = arith.constant 0 : i32
    %c0_i32_1 = arith.constant 0 : i32
    return %c0_i32, %c0_i32_0 : i32, i32
  }
  func.func @transform_5(%arg0: i32, %arg1: i32) -> (i32, i32, i32) {
    %c0_i32 = arith.constant 0 : i32
    %c0_i32_0 = arith.constant 0 : i32
    %c0_i32_1 = arith.constant 0 : i32
    %c0_i32_2 = arith.constant 0 : i32
    return %c0_i32, %c0_i32_0, %c0_i32_1 : i32, i32, i32
  }
  func.func @transform_6(%arg0: i32, %arg1: i32) -> (i32, i32) {
    %c0_i32 = arith.constant 0 : i32
    %c0_i32_0 = arith.constant 0 : i32
    %c0_i32_1 = arith.constant 0 : i32
    return %c0_i32, %c0_i32_0 : i32, i32
  }
  func.func @transform_7(%arg0: i32, %arg1: i32) -> (i32, i32, i32) {
    %c0_i32 = arith.constant 0 : i32
    %c0_i32_0 = arith.constant 0 : i32
    return %arg0, %arg1, %c0_i32 : i32, i32, i32
  }
  func.func @transform_8(%arg0: i32, %arg1: i32) -> (i32, i32, i32) {
    %c0_i32 = arith.constant 0 : i32
    %c0_i32_0 = arith.constant 0 : i32
    %c0_i32_1 = arith.constant 0 : i32
    return %arg0, %c0_i32, %c0_i32_0 : i32, i32, i32
  }
}

</mosaic_0001>

<llo_original>
// kernel: dense_block_pallas.4
$region0: #{dense_block_pallas.4}
  #allocation0 [shape = 'u32[]', space=smem, size = 0x4, offset = 0x4, fixed_abs, tag = 'smem constant byte address 0x4 - core index']
  #allocation1 [shape = 'u32[144,128]{1,0:T(1,128)}', space=vmem, size = 0x12000, scoped, tag = 'internal scratch']
  %s0 = inlined_call_operand.hbm [shape: f32[2,16,128], index: 0, kind: input, shape index: {}]
  %s1 = inlined_call_operand.hbm [shape: f32[2,2,128], index: 1, kind: output, shape index: {}]
  %s2 = sld [smem:[#allocation0]]
  $region45: #{dense_block_pallas.4} parent=0
    _
  %s4 = ssub.s32 1, %s2
  %s5 = scalar_select 0, %s4, %s2
  $region1: #{dense_block_pallas.4} parent=0
    #allocation2 [shape = 'u8[16384]{0}', space=vmem, size = 0x4000, scoped, tag = 'input window, operand 0']
    #allocation3 [shape = 's32[2]{0}', space=sflag, size = 0x8, scoped, tag = 'scoped memory for dense_block_pallas.4']
    #allocation4 [shape = 's32[2]{0}', space=sflag, size = 0x8, scoped, tag = 'scoped memory for dense_block_pallas.4']
    #allocation5 [shape = 'u8[2048]{0}', space=vmem, size = 0x800, scoped, tag = 'output window, operand 0']
    %6 = vsyncpa [#allocation3], 0
    %s7 = scalar_lea.sflag [#allocation3], 1
    %8 = vsyncpa %s7, 0
    %9 = vsyncpa [#allocation4], 0
    %s10 = scalar_lea.sflag [#allocation4], 1
    %11 = vsyncpa %s10, 0
    loop: start=0, step=1, limit=4
    $region2: #{dense_block_pallas.4} parent=1 // loop_pre_header
      _
    $region3: #{dense_block_pallas.4} parent=1 // loop_header
      %s13 = sphi 0, %s17
      %p14 = scmp.ge.s32.totalorder %s13, 4
      %s20 = sphi 0, %s32
      %s21 = sphi 0, %s28
      %s22 = sphi 0, %s20
      %s23 = sphi 0, %s21
      %s24 = sphi 0, %s22
      %s25 = sphi 0, %s23
      %s37 = sphi 0, %s39
      %s40 = sphi 0, %s37
      %s41 = sphi 0, %s40
      %s57 = sphi 0, %s41
      %s63 = sphi 0, %s65
      %s66 = sphi 0, %s63
      %s67 = sphi 0, %s66
      %s83 = sphi 0, %s67
    $region4: #{dense_block_pallas.4} parent=1 // loop_header_branch
      %16 = sbr.rel (%p14) target = $region8
    $region5: #{dense_block_pallas.4} parent=1 // loop_body
      %s18 = ssub.s32 %s13, 1
      %s19 = ssub.s32 %s13, 2
      %s26 = sadd.s32 1, %s21
      %p27 = scmp.ge.s32.totalorder %s26, 1
      %s28 = scalar_select %p27, 0, %s26
      %s29 = sadd.s32 1, %s20
      %s30 = scalar_select %p27, %s29, %s20
      %p31 = scmp.ge.s32.totalorder %s30, 2
      %s32 = scalar_select %p31, 0, %s30
      %s33 = ssub.s32 %s20, %s32
      %s34 = ssub.s32 %s21, %s28
      %s35 = sor.u32 %s33, %s34
      %p36 = scmp.eq.s32.totalorder %s35, 0
      %s38 = sadd.s32 %s37, 1
      %s39 = scalar_select %p36, %s37, %s38
      %p42 = pneg %p36
      %p43 = scmp.eq.s32.totalorder %s13, 1
      %p44 = por %p42, %p43
      %p45 = scmp.ne.s32.totalorder %s37, %s40
      %p46 = scmp.eq.s32.totalorder %s13, 0
      %p47 = por %p45, %p46
      %p48 = scmp.ne.s32.totalorder %s37, %s40
      %p49 = scmp.eq.s32.totalorder %s18, 1
      %p50 = por %p48, %p49
      %p51 = scmp.ne.s32.totalorder %s40, %s41
      %p52 = scmp.eq.s32.totalorder %s18, 0
      %p53 = por %p51, %p52
      %p54 = scmp.ne.s32.totalorder %s40, %s41
      %p55 = scmp.eq.s32.totalorder %s19, 1
      %p56 = por %p54, %p55
      %p58 = scmp.ne.s32.totalorder %s41, %s57
      %p59 = scmp.eq.s32.totalorder %s19, 0
      %p60 = por %p58, %p59
      %s61 = ssub.s32 %s20, %s32
      %p62 = scmp.eq.s32.totalorder %s61, 0
      %s64 = sadd.s32 %s63, 1
      %s65 = scalar_select %p62, %s63, %s64
      %p68 = pneg %p62
      %p69 = scmp.eq.s32.totalorder %s13, 1
      %p70 = por %p68, %p69
      %p71 = scmp.ne.s32.totalorder %s63, %s66
      %p72 = scmp.eq.s32.totalorder %s13, 0
      %p73 = por %p71, %p72
      %p74 = scmp.ne.s32.totalorder %s63, %s66
      %p75 = scmp.eq.s32.totalorder %s18, 1
      %p76 = por %p74, %p75
      %p77 = scmp.ne.s32.totalorder %s66, %s67
      %p78 = scmp.eq.s32.totalorder %s18, 0
      %p79 = por %p77, %p78
      %p80 = scmp.ne.s32.totalorder %s66, %s67
      %p81 = scmp.eq.s32.totalorder %s19, 1
      %p82 = por %p80, %p81
      %p84 = scmp.ne.s32.totalorder %s67, %s83
      %p85 = scmp.eq.s32.totalorder %s19, 0
      %p86 = por %p84, %p85
      %p87 = scmp.le.s32.totalorder 1, %s13
      %p88 = scmp.lt.s32.totalorder %s13, 3
      %p89 = pnand %p87, %p88
      %p90 = pneg %p89
      // Predicated region
      $region9: #{dense_block_pallas.4} parent=5 // pred_check
        _
      $region10: #{dense_block_pallas.4} parent=5 // pred_check_branch
        %92 = sbr.rel (%p89) target = $region12
      $region11: #{dense_block_pallas.4} parent=5 // pred_region
        %s93 = ssub.s32 %s13, 1
      $region12: #{dense_block_pallas.4} parent=5 // pred_fallthru
        _
      %p94 = scmp.lt.s32.totalorder %s13, 2
      // Predicated region
      $region13: #{dense_block_pallas.4} parent=5 // pred_check
        %p95 = pneg %p94
      $region14: #{dense_block_pallas.4} parent=5 // pred_check_branch
        %97 = sbr.rel (%p95) target = $region16
      $region15: #{dense_block_pallas.4} parent=5 // pred_region
        // Predicated region
        $region17: #{dense_block_pallas.4} parent=15 // pred_check
          %p98 = pneg %p47
        $region18: #{dense_block_pallas.4} parent=15 // pred_check_branch
          %100 = sbr.rel (%p98) target = $region20
        $region19: #{dense_block_pallas.4} parent=15 // pred_region
          %s101 = sand.u32 %s37, 1
          %s102 = scalar_lea.sflag [#allocation3], %s101
          %s103 = sand.u32 %s37, 1
          %s104 = smul.addr %s103, 16
          %s105 = scalar_lea.vmem [#allocation2], %s104
          %s106 = smul.u32 2, %s21
          %s108 = ssub.s32 256, 256
          %109 = vsyncadd %s102, %s108
          %s110 = smul.addr %s20, 2
          %s111 = sadd.s32 %s106, %s110
          %s112 = smul.addr %s111, 128
          %s113 = scalar_lea.hbm %s0, %s112
          %s114 = sshll.u32 %s105, 4
          %s115 = int_to_ptr.vmem [resolvable:$true] %s114
          %120 = dma.hbm_to_vmem [thread:$0]  %s113, 256, %s115, %s102, 128, 128, 8
        $region20: #{dense_block_pallas.4} parent=15 // pred_fallthru
          _
      $region16: #{dense_block_pallas.4} parent=5 // pred_fallthru
        _
      %p121 = scmp.le.s32.totalorder 1, %s13
      %p122 = scmp.lt.s32.totalorder %s13, 3
      %p123 = pnand %p121, %p122
      %p124 = pneg %p123
      // Predicated region
      $region21: #{dense_block_pallas.4} parent=5 // pred_check
        _
      $region22: #{dense_block_pallas.4} parent=5 // pred_check_branch
        %126 = sbr.rel (%p123) target = $region24
      $region23: #{dense_block_pallas.4} parent=5 // pred_region
        %s127 = ssub.s32 %s13, 1
        %s128 = sand.u32 %s40, 1
        %s129 = scalar_lea.sflag [#allocation3], %s128
        %s130 = sand.u32 %s40, 1
        %s131 = smul.addr %s130, 16
        %s132 = scalar_lea.vmem [#allocation2], %s131
        // Predicated region
        $region25: #{dense_block_pallas.4} parent=23 // pred_check
          %p133 = pneg %p53
        $region26: #{dense_block_pallas.4} parent=23 // pred_check_branch
          %135 = sbr.rel (%p133) target = $region28
        $region27: #{dense_block_pallas.4} parent=23 // pred_region
          %136 = dma.done %s129, 256
        $region28: #{dense_block_pallas.4} parent=23 // pred_fallthru
          _
        %s137 = sand.u32 %s40, 1
        %s138 = scalar_lea.sflag [#allocation3], %s137
        %s139 = sand.u32 %s40, 1
        %s140 = smul.addr %s139, 16
        %s141 = scalar_lea.vmem [#allocation2], %s140
        %p142 = pneg %p53
        %p143 = pneg %p50
        %p144 = pneg %p79
        %p145 = pneg %p76
        %s146 = sand.u32 %s66, 1
        %s147 = scalar_lea.sflag [#allocation4], %s146
        %s148 = sand.u32 %s66, 1
        %s149 = smul.addr %s148, 2
        %s150 = scalar_lea.vmem [#allocation5], %s149
        %s151 = smul.u32 2, %s23
        %p152 = scmp.eq.s32.totalorder %s23, 0
        // Predicated region
        $region29: #{dense_block_pallas.4} parent=23 // pred_check
          %p153 = pneg %p152
        $region30: #{dense_block_pallas.4} parent=23 // pred_check_branch
          %155 = sbr.rel (%p153) target = $region32
        $region31: #{dense_block_pallas.4} parent=23 // pred_region
          %156 = vst [vmem:[%s150] sm:$0x3] 0.0
        $region32: #{dense_block_pallas.4} parent=23 // pred_fallthru
          _
        %v157 = vld [vmem:[%s132] sm:$0xff]
        %v158 = vld [vmem:[%s132 + $0x8] sm:$0xff]
        %v159 = vadd.f32 %v157, %v158
        %v160 = vrot.slane %v159, 4
        %v161 = vadd.f32 %v159, %v160
        %v162 = vrot.slane %v161, 2
        %v163 = vadd.f32 %v161, %v162
        %v164 = vrot.slane %v163, 1
        %v165 = vadd.f32 %v163, %v164
        %v166 = vmul.f32 %v157, %v157
        %v167 = vmul.f32 %v158, %v158
        %v168 = vadd.f32 %v166, %v167
        %v169 = vrot.slane %v168, 4
        %v170 = vadd.f32 %v168, %v169
        %v171 = vrot.slane %v170, 2
        %v172 = vadd.f32 %v170, %v171
        %v173 = vrot.slane %v172, 1
        %v174 = vadd.f32 %v172, %v173
        %v175 = vld [vmem:[%s150] sm:$0x3]
        %vm176 = vcmask 1040384
        %v177 = vsel %vm176, %v165, %v174
        %v178 = vadd.f32 %v175, %v177
        %179 = vst [vmem:[%s150] sm:$0x3] %v178
        %s180 = sand.u32 %s66, 1
        %s181 = scalar_lea.sflag [#allocation4], %s180
        %s182 = sand.u32 %s66, 1
        %s183 = smul.addr %s182, 2
        %s184 = scalar_lea.vmem [#allocation5], %s183
        // Predicated region
        $region33: #{dense_block_pallas.4} parent=23 // pred_check
          %p185 = pneg %p76
        $region34: #{dense_block_pallas.4} parent=23 // pred_check_branch
          %187 = sbr.rel (%p185) target = $region36
        $region35: #{dense_block_pallas.4} parent=23 // pred_region
          %s189 = ssub.s32 32, 32
          %190 = vsyncadd %s181, %s189
          %s191 = smul.addr %s22, 32
          %s192 = scalar_lea.hbm %s1, %s191
          %s194 = sshll.u32 %s184, 4
          %s195 = int_to_ptr.vmem [resolvable:$true] %s194
          %197 = dma.vmem_to_hbm [thread:$0]  %s195, 32, %s192, %s181
        $region36: #{dense_block_pallas.4} parent=23 // pred_fallthru
          _
      $region24: #{dense_block_pallas.4} parent=5 // pred_fallthru
        _
      %p198 = scmp.le.s32.totalorder 2, %s13
      // Predicated region
      $region37: #{dense_block_pallas.4} parent=5 // pred_check
        %p199 = pneg %p198
      $region38: #{dense_block_pallas.4} parent=5 // pred_check_branch
        %201 = sbr.rel (%p199) target = $region40
      $region39: #{dense_block_pallas.4} parent=5 // pred_region
        %s202 = ssub.s32 %s13, 2
        // Predicated region
        $region41: #{dense_block_pallas.4} parent=39 // pred_check
          %p203 = pneg %p82
        $region42: #{dense_block_pallas.4} parent=39 // pred_check_branch
          %205 = sbr.rel (%p203) target = $region44
        $region43: #{dense_block_pallas.4} parent=39 // pred_region
          %s206 = sand.u32 %s67, 1
          %s207 = scalar_lea.sflag [#allocation4], %s206
          %s208 = sand.u32 %s67, 1
          %s209 = smul.addr %s208, 2
          %s210 = scalar_lea.vmem [#allocation5], %s209
          %211 = dma.done %s207, 32
        $region44: #{dense_block_pallas.4} parent=39 // pred_fallthru
          _
      $region40: #{dense_block_pallas.4} parent=5 // pred_fallthru
        _
    $region6: #{dense_block_pallas.4} parent=1 // loop_footer
      %s17 = sadd.s32 1, %s13
    $region7: #{dense_block_pallas.4} parent=1 // loop_footer_branch
      %12 = sbr.rel target = $region3
    $region8: #{dense_block_pallas.4} parent=1 // loop_exit
      _
    %212 = vsyncpa [#allocation3], 1
    %s213 = scalar_lea.sflag [#allocation3], 1
    %214 = vsyncpa %s213, 1
    %215 = vsyncpa [#allocation4], 1
    %s216 = scalar_lea.sflag [#allocation4], 1
    %217 = vsyncpa %s216, 1

// kernel: dense_block_pallas.5
$region0: #{dense_block_pallas.5}
  #allocation0 [shape = 'u32[]', space=smem, size = 0x4, offset = 0x4, fixed_abs, tag = 'smem constant byte address 0x4 - core index']
  #allocation1 [shape = 'u32[144,128]{1,0:T(1,128)}', space=vmem, size = 0x12000, scoped, tag = 'internal scratch']
  %s0 = inlined_call_operand.hbm [shape: f32[2,16,128], index: 0, kind: input, shape index: {}, may-alias: {0,1,2}]
  %s1 = inlined_call_operand.hbm [shape: f32[2,16,128], index: 1, kind: input, shape index: {}, may-alias: {0,1,2}]
  %s2 = inlined_call_operand.hbm [shape: f32[2,16,128], index: 2, kind: input, shape index: {}, may-alias: {0,1,2}]
  %s3 = inlined_call_operand.hbm [shape: f32[1,128], index: 3, kind: input, shape index: {}]
  %s4 = inlined_call_operand.hbm [shape: f32[1,128], index: 4, kind: input, shape index: {}]
  %s5 = inlined_call_operand.hbm [shape: bf16[3,128,128], index: 5, kind: input, shape index: {}]
  %s6 = inlined_call_operand.hbm [shape: f32[1,128], index: 6, kind: input, shape index: {}]
  %s7 = inlined_call_operand.hbm [shape: f32[2,16,128], index: 7, kind: output, shape index: {0}]
  %s8 = inlined_call_operand.hbm [shape: f32[2,2,128], index: 8, kind: output, shape index: {1}]
  %9 = xla_tuple %s7, %s8
  %s10 = sld [smem:[#allocation0]]
  $region101: #{dense_block_pallas.5} parent=0
    _
  %s12 = ssub.s32 1, %s10
  %s13 = scalar_select 0, %s12, %s10
  $region1: #{dense_block_pallas.5} parent=0
    #allocation2 [shape = 'u8[16384]{0}', space=vmem, size = 0x4000, scoped, tag = 'input window, operand 0']
    #allocation3 [shape = 's32[2]{0}', space=sflag, size = 0x8, scoped, tag = 'scoped memory for dense_block_pallas.5']
    #allocation4 [shape = 's32[2]{0}', space=sflag, size = 0x8, scoped, tag = 'scoped memory for dense_block_pallas.5']
    #allocation5 [shape = 'u8[8192]{0}', space=vmem, size = 0x2000, scoped, tag = 'input window, operand 1']
    #allocation6 [shape = 's32[2]{0}', space=sflag, size = 0x8, scoped, tag = 'scoped memory for dense_block_pallas.5']
    #allocation7 [shape = 'u8[8192]{0}', space=vmem, size = 0x2000, scoped, tag = 'input window, operand 2']
    #allocation8 [shape = 'u8[512]{0}', space=vmem, size = 0x400, scoped, tag = 'input window, operand 3, single buffered']
    #allocation9 [shape = 's32[1]{0}', space=sflag, size = 0x4, scoped, tag = 'scoped memory for dense_block_pallas.5']
    #allocation10 [shape = 'u8[512]{0}', space=vmem, size = 0x400, scoped, tag = 'input window, operand 4, single buffered']
    #allocation11 [shape = 'u8[98304]{0}', space=vmem, size = 0x18000, scoped, tag = 'input window, operand 5, single buffered']
    #allocation12 [shape = 's32[1]{0}', space=sflag, size = 0x4, scoped, tag = 'scoped memory for dense_block_pallas.5']
    #allocation13 [shape = 'u8[512]{0}', space=vmem, size = 0x400, scoped, tag = 'input window, operand 6, single buffered']
    #allocation14 [shape = 'u8[16384]{0}', space=vmem, size = 0x4000, scoped, tag = 'output window, operand 0']
    #allocation15 [shape = 'u8[2048]{0}', space=vmem, size = 0x800, scoped, tag = 'output window, operand 1']
    #allocation16 [shape = 's32[2]{0}', space=sflag, size = 0x8, scoped, tag = 'scoped memory for dense_block_pallas.5']
    %14 = vsyncpa [#allocation3], 0
    %s15 = scalar_lea.sflag [#allocation3], 1
    %16 = vsyncpa %s15, 0
    %17 = vsyncpa [#allocation6], 0
    %s18 = scalar_lea.sflag [#allocation6], 1
    %19 = vsyncpa %s18, 0
    %20 = vsyncpa [#allocation9], 0
    %21 = vsyncpa [#allocation12], 0
    %22 = vsyncpa [#allocation4], 0
    %s23 = scalar_lea.sflag [#allocation4], 1
    %24 = vsyncpa %s23, 0
    %25 = vsyncpa [#allocation16], 0
    %s26 = scalar_lea.sflag [#allocation16], 1
    %27 = vsyncpa %s26, 0
    loop: start=0, step=1, limit=4
    $region2: #{dense_block_pallas.5} parent=1 // loop_pre_header
      _
    $region3: #{dense_block_pallas.5} parent=1 // loop_header
      %s29 = sphi 0, %s33
      %p30 = scmp.ge.s32.totalorder %s29, 4
      %s36 = sphi 0, %s48
      %s37 = sphi 0, %s44
      %s38 = sphi 0, %s36
      %s39 = sphi 0, %s37
      %s40 = sphi 0, %s38
      %s41 = sphi 0, %s39
      %s53 = sphi 0, %s55
      %s56 = sphi 0, %s53
      %s57 = sphi 0, %s56
      %s73 = sphi 0, %s57
      %s89 = sphi 0, %s91
      %s92 = sphi 0, %s89
      %s93 = sphi 0, %s92
      %s109 = sphi 0, %s93
      %s125 = sphi 0, %s127
      %s128 = sphi 0, %s125
      %s129 = sphi 0, %s128
      %s145 = sphi 0, %s129
      %s149 = sphi 0, %s149
      %s151 = sphi 0, %s149
      %s152 = sphi 0, %s151
      %s166 = sphi 0, %s152
      %s170 = sphi 0, %s170
      %s172 = sphi 0, %s170
      %s173 = sphi 0, %s172
      %s187 = sphi 0, %s173
      %s191 = sphi 0, %s191
      %s193 = sphi 0, %s191
      %s194 = sphi 0, %s193
      %s208 = sphi 0, %s194
      %s212 = sphi 0, %s212
      %s214 = sphi 0, %s212
      %s215 = sphi 0, %s214
      %s229 = sphi 0, %s215
      %s237 = sphi 0, %s239
      %s240 = sphi 0, %s237
      %s241 = sphi 0, %s240
      %s257 = sphi 0, %s241
      %s263 = sphi 0, %s265
      %s266 = sphi 0, %s263
      %s267 = sphi 0, %s266
      %s283 = sphi 0, %s267
    $region4: #{dense_block_pallas.5} parent=1 // loop_header_branch
      %32 = sbr.rel (%p30) target = $region8
    $region5: #{dense_block_pallas.5} parent=1 // loop_body
      %s34 = ssub.s32 %s29, 1
      %s35 = ssub.s32 %s29, 2
      %s42 = sadd.s32 1, %s37
      %p43 = scmp.ge.s32.totalorder %s42, 1
      %s44 = scalar_select %p43, 0, %s42
      %s45 = sadd.s32 1, %s36
      %s46 = scalar_select %p43, %s45, %s36
      %p47 = scmp.ge.s32.totalorder %s46, 2
      %s48 = scalar_select %p47, 0, %s46
      %s49 = ssub.s32 %s36, %s48
      %s50 = ssub.s32 %s37, %s44
      %s51 = sor.u32 %s49, %s50
      %p52 = scmp.eq.s32.totalorder %s51, 0
      %s54 = sadd.s32 %s53, 1
      %s55 = scalar_select %p52, %s53, %s54
      %p58 = pneg %p52
      %p59 = scmp.eq.s32.totalorder %s29, 1
      %p60 = por %p58, %p59
      %p61 = scmp.ne.s32.totalorder %s53, %s56
      %p62 = scmp.eq.s32.totalorder %s29, 0
      %p63 = por %p61, %p62
      %p64 = scmp.ne.s32.totalorder %s53, %s56
      %p65 = scmp.eq.s32.totalorder %s34, 1
      %p66 = por %p64, %p65
      %p67 = scmp.ne.s32.totalorder %s56, %s57
      %p68 = scmp.eq.s32.totalorder %s34, 0
      %p69 = por %p67, %p68
      %p70 = scmp.ne.s32.totalorder %s56, %s57
      %p71 = scmp.eq.s32.totalorder %s35, 1
      %p72 = por %p70, %p71
      %p74 = scmp.ne.s32.totalorder %s57, %s73
      %p75 = scmp.eq.s32.totalorder %s35, 0
      %p76 = por %p74, %p75
      %s77 = smul.u32 %s37, 2
      %s78 = ssub.s32 %s77, 1
      %p79 = scmp.gt.s32.totalorder %s78, 0
      %s80 = scalar_select %p79, %s78, 0
      %s81 = smul.u32 %s44, 2
      %s82 = ssub.s32 %s81, 1
      %p83 = scmp.gt.s32.totalorder %s82, 0
      %s84 = scalar_select %p83, %s82, 0
      %s85 = ssub.s32 %s36, %s48
      %s86 = ssub.s32 %s80, %s84
      %s87 = sor.u32 %s85, %s86
      %p88 = scmp.eq.s32.totalorder %s87, 0
      %s90 = sadd.s32 %s89, 1
      %s91 = scalar_select %p88, %s89, %s90
      %p94 = pneg %p88
      %p95 = scmp.eq.s32.totalorder %s29, 1
      %p96 = por %p94, %p95
      %p97 = scmp.ne.s32.totalorder %s89, %s92
      %p98 = scmp.eq.s32.totalorder %s29, 0
      %p99 = por %p97, %p98
      %p100 = scmp.ne.s32.totalorder %s89, %s92
      %p101 = scmp.eq.s32.totalorder %s34, 1
      %p102 = por %p100, %p101
      %p103 = scmp.ne.s32.totalorder %s92, %s93
      %p104 = scmp.eq.s32.totalorder %s34, 0
      %p105 = por %p103, %p104
      %p106 = scmp.ne.s32.totalorder %s92, %s93
      %p107 = scmp.eq.s32.totalorder %s35, 1
      %p108 = por %p106, %p107
      %p110 = scmp.ne.s32.totalorder %s93, %s109
      %p111 = scmp.eq.s32.totalorder %s35, 0
      %p112 = por %p110, %p111
      %s113 = sadd.s32 %s37, 1
      %s114 = smul.u32 %s113, 2
      %p115 = scmp.lt.s32.totalorder %s114, 1
      %s116 = scalar_select %p115, %s114, 1
      %s117 = sadd.s32 %s44, 1
      %s118 = smul.u32 %s117, 2
      %p119 = scmp.lt.s32.totalorder %s118, 1
      %s120 = scalar_select %p119, %s118, 1
      %s121 = ssub.s32 %s36, %s48
      %s122 = ssub.s32 %s116, %s120
      %s123 = sor.u32 %s121, %s122
      %p124 = scmp.eq.s32.totalorder %s123, 0
      %s126 = sadd.s32 %s125, 1
      %s127 = scalar_select %p124, %s125, %s126
      %p130 = pneg %p124
      %p131 = scmp.eq.s32.totalorder %s29, 1
      %p132 = por %p130, %p131
      %p133 = scmp.ne.s32.totalorder %s125, %s128
      %p134 = scmp.eq.s32.totalorder %s29, 0
      %p135 = por %p133, %p134
      %p136 = scmp.ne.s32.totalorder %s125, %s128
      %p137 = scmp.eq.s32.totalorder %s34, 1
      %p138 = por %p136, %p137
      %p139 = scmp.ne.s32.totalorder %s128, %s129
      %p140 = scmp.eq.s32.totalorder %s34, 0
      %p141 = por %p139, %p140
      %p142 = scmp.ne.s32.totalorder %s128, %s129
      %p143 = scmp.eq.s32.totalorder %s35, 1
      %p144 = por %p142, %p143
      %p146 = scmp.ne.s32.totalorder %s129, %s145
      %p147 = scmp.eq.s32.totalorder %s35, 0
      %p148 = por %p146, %p147
      %s150 = sadd.s32 %s149, 1
      %p153 = scmp.eq.s32.totalorder %s29, 1
      %p154 = scmp.ne.s32.totalorder %s149, %s151
      %p155 = scmp.eq.s32.totalorder %s29, 0
      %p156 = por %p154, %p155
      %p157 = scmp.ne.s32.totalorder %s149, %s151
      %p158 = scmp.eq.s32.totalorder %s34, 1
      %p159 = por %p157, %p158
      %p160 = scmp.ne.s32.totalorder %s151, %s152
      %p161 = scmp.eq.s32.totalorder %s34, 0
      %p162 = por %p160, %p161
      %p163 = scmp.ne.s32.totalorder %s151, %s152
      %p164 = scmp.eq.s32.totalorder %s35, 1
      %p165 = por %p163, %p164
      %p167 = scmp.ne.s32.totalorder %s152, %s166
      %p168 = scmp.eq.s32.totalorder %s35, 0
      %p169 = por %p167, %p168
      %s171 = sadd.s32 %s170, 1
      %p174 = scmp.eq.s32.totalorder %s29, 1
      %p175 = scmp.ne.s32.totalorder %s170, %s172
      %p176 = scmp.eq.s32.totalorder %s29, 0
      %p177 = por %p175, %p176
      %p178 = scmp.ne.s32.totalorder %s170, %s172
      %p179 = scmp.eq.s32.totalorder %s34, 1
      %p180 = por %p178, %p179
      %p181 = scmp.ne.s32.totalorder %s172, %s173
      %p182 = scmp.eq.s32.totalorder %s34, 0
      %p183 = por %p181, %p182
      %p184 = scmp.ne.s32.totalorder %s172, %s173
      %p185 = scmp.eq.s32.totalorder %s35, 1
      %p186 = por %p184, %p185
      %p188 = scmp.ne.s32.totalorder %s173, %s187
      %p189 = scmp.eq.s32.totalorder %s35, 0
      %p190 = por %p188, %p189
      %s192 = sadd.s32 %s191, 1
      %p195 = scmp.eq.s32.totalorder %s29, 1
      %p196 = scmp.ne.s32.totalorder %s191, %s193
      %p197 = scmp.eq.s32.totalorder %s29, 0
      %p198 = por %p196, %p197
      %p199 = scmp.ne.s32.totalorder %s191, %s193
      %p200 = scmp.eq.s32.totalorder %s34, 1
      %p201 = por %p199, %p200
      %p202 = scmp.ne.s32.totalorder %s193, %s194
      %p203 = scmp.eq.s32.totalorder %s34, 0
      %p204 = por %p202, %p203
      %p205 = scmp.ne.s32.totalorder %s193, %s194
      %p206 = scmp.eq.s32.totalorder %s35, 1
      %p207 = por %p205, %p206
      %p209 = scmp.ne.s32.totalorder %s194, %s208
      %p210 = scmp.eq.s32.totalorder %s35, 0
      %p211 = por %p209, %p210
      %s213 = sadd.s32 %s212, 1
      %p216 = scmp.eq.s32.totalorder %s29, 1
      %p217 = scmp.ne.s32.totalorder %s212, %s214
      %p218 = scmp.eq.s32.totalorder %s29, 0
      %p219 = por %p217, %p218
      %p220 = scmp.ne.s32.totalorder %s212, %s214
      %p221 = scmp.eq.s32.totalorder %s34, 1
      %p222 = por %p220, %p221
      %p223 = scmp.ne.s32.totalorder %s214, %s215
      %p224 = scmp.eq.s32.totalorder %s34, 0
      %p225 = por %p223, %p224
      %p226 = scmp.ne.s32.totalorder %s214, %s215
      %p227 = scmp.eq.s32.totalorder %s35, 1
      %p228 = por %p226, %p227
      %p230 = scmp.ne.s32.totalorder %s215, %s229
      %p231 = scmp.eq.s32.totalorder %s35, 0
      %p232 = por %p230, %p231
      %s233 = ssub.s32 %s36, %s48
      %s234 = ssub.s32 %s37, %s44
      %s235 = sor.u32 %s233, %s234
      %p236 = scmp.eq.s32.totalorder %s235, 0
      %s238 = sadd.s32 %s237, 1
      %s239 = scalar_select %p236, %s237, %s238
      %p242 = pneg %p236
      %p243 = scmp.eq.s32.totalorder %s29, 1
      %p244 = por %p242, %p243
      %p245 = scmp.ne.s32.totalorder %s237, %s240
      %p246 = scmp.eq.s32.totalorder %s29, 0
      %p247 = por %p245, %p246
      %p248 = scmp.ne.s32.totalorder %s237, %s240
      %p249 = scmp.eq.s32.totalorder %s34, 1
      %p250 = por %p248, %p249
      %p251 = scmp.ne.s32.totalorder %s240, %s241
      %p252 = scmp.eq.s32.totalorder %s34, 0
      %p253 = por %p251, %p252
      %p254 = scmp.ne.s32.totalorder %s240, %s241
      %p255 = scmp.eq.s32.totalorder %s35, 1
      %p256 = por %p254, %p255
      %p258 = scmp.ne.s32.totalorder %s241, %s257
      %p259 = scmp.eq.s32.totalorder %s35, 0
      %p260 = por %p258, %p259
      %s261 = ssub.s32 %s36, %s48
      %p262 = scmp.eq.s32.totalorder %s261, 0
      %s264 = sadd.s32 %s263, 1
      %s265 = scalar_select %p262, %s263, %s264
      %p268 = pneg %p262
      %p269 = scmp.eq.s32.totalorder %s29, 1
      %p270 = por %p268, %p269
      %p271 = scmp.ne.s32.totalorder %s263, %s266
      %p272 = scmp.eq.s32.totalorder %s29, 0
      %p273 = por %p271, %p272
      %p274 = scmp.ne.s32.totalorder %s263, %s266
      %p275 = scmp.eq.s32.totalorder %s34, 1
      %p276 = por %p274, %p275
      %p277 = scmp.ne.s32.totalorder %s266, %s267
      %p278 = scmp.eq.s32.totalorder %s34, 0
      %p279 = por %p277, %p278
      %p280 = scmp.ne.s32.totalorder %s266, %s267
      %p281 = scmp.eq.s32.totalorder %s35, 1
      %p282 = por %p280, %p281
      %p284 = scmp.ne.s32.totalorder %s267, %s283
      %p285 = scmp.eq.s32.totalorder %s35, 0
      %p286 = por %p284, %p285
      %p287 = scmp.le.s32.totalorder 1, %s29
      %p288 = scmp.lt.s32.totalorder %s29, 3
      %p289 = pnand %p287, %p288
      %p290 = pneg %p289
      // Predicated region
      $region9: #{dense_block_pallas.5} parent=5 // pred_check
        _
      $region10: #{dense_block_pallas.5} parent=5 // pred_check_branch
        %292 = sbr.rel (%p289) target = $region12
      $region11: #{dense_block_pallas.5} parent=5 // pred_region
        %s293 = ssub.s32 %s29, 1
        // Predicated region
        $region13: #{dense_block_pallas.5} parent=11 // pred_check
          %p294 = pneg %p162
        $region14: #{dense_block_pallas.5} parent=11 // pred_check_branch
          %296 = sbr.rel (%p294) target = $region16
        $region15: #{dense_block_pallas.5} parent=11 // pred_region
          %s298 = ssub.s32 16, 16
          %299 = vsyncadd [#allocation9], %s298
          %s301 = sshll.u32 [#allocation8], 4
          %s302 = int_to_ptr.vmem [resolvable:$true] %s301
          %304 = dma.hbm_to_vmem [thread:$0]  %s3, 16, %s302, [#allocation9]
        $region16: #{dense_block_pallas.5} parent=11 // pred_fallthru
          _
        // Predicated region
        $region17: #{dense_block_pallas.5} parent=11 // pred_check
          %p305 = pneg %p183
        $region18: #{dense_block_pallas.5} parent=11 // pred_check_branch
          %307 = sbr.rel (%p305) target = $region20
        $region19: #{dense_block_pallas.5} parent=11 // pred_region
          %s309 = ssub.s32 16, 16
          %310 = vsyncadd [#allocation9], %s309
          %s312 = sshll.u32 [#allocation10], 4
          %s313 = int_to_ptr.vmem [resolvable:$true] %s312
          %315 = dma.hbm_to_vmem [thread:$0]  %s4, 16, %s313, [#allocation9]
        $region20: #{dense_block_pallas.5} parent=11 // pred_fallthru
          _
        // Predicated region
        $region21: #{dense_block_pallas.5} parent=11 // pred_check
          %p316 = pneg %p204
        $region22: #{dense_block_pallas.5} parent=11 // pred_check_branch
          %318 = sbr.rel (%p316) target = $region24
        $region23: #{dense_block_pallas.5} parent=11 // pred_region
          %s320 = ssub.s32 3072, 3072
          %321 = vsyncadd [#allocation12], %s320
          %s322 = sshll.u32 [#allocation11], 4
          %s323 = int_to_ptr.vmem [resolvable:$true] %s322
          %328 = dma.hbm_to_vmem [thread:$0]  %s5, 3072, %s323, [#allocation12], 64, 64, 4
        $region24: #{dense_block_pallas.5} parent=11 // pred_fallthru
          _
        // Predicated region
        $region25: #{dense_block_pallas.5} parent=11 // pred_check
          %p329 = pneg %p225
        $region26: #{dense_block_pallas.5} parent=11 // pred_check_branch
          %331 = sbr.rel (%p329) target = $region28
        $region27: #{dense_block_pallas.5} parent=11 // pred_region
          %s333 = ssub.s32 16, 16
          %334 = vsyncadd [#allocation12], %s333
          %s336 = sshll.u32 [#allocation13], 4
          %s337 = int_to_ptr.vmem [resolvable:$true] %s336
          %339 = dma.hbm_to_vmem [thread:$0]  %s6, 16, %s337, [#allocation12]
        $region28: #{dense_block_pallas.5} parent=11 // pred_fallthru
          _
      $region12: #{dense_block_pallas.5} parent=5 // pred_fallthru
        _
      %p340 = scmp.lt.s32.totalorder %s29, 2
      // Predicated region
      $region29: #{dense_block_pallas.5} parent=5 // pred_check
        %p341 = pneg %p340
      $region30: #{dense_block_pallas.5} parent=5 // pred_check_branch
        %343 = sbr.rel (%p341) target = $region32
      $region31: #{dense_block_pallas.5} parent=5 // pred_region
        // Predicated region
        $region33: #{dense_block_pallas.5} parent=31 // pred_check
          %p344 = pneg %p63
        $region34: #{dense_block_pallas.5} parent=31 // pred_check_branch
          %346 = sbr.rel (%p344) target = $region36
        $region35: #{dense_block_pallas.5} parent=31 // pred_region
          %s347 = sand.u32 %s53, 1
          %s348 = scalar_lea.sflag [#allocation3], %s347
          %s349 = sand.u32 %s53, 1
          %s350 = smul.addr %s349, 16
          %s351 = scalar_lea.vmem [#allocation2], %s350
          %s352 = smul.u32 2, %s37
          %s354 = ssub.s32 256, 256
          %355 = vsyncadd %s348, %s354
          %s356 = smul.addr %s36, 2
          %s357 = sadd.s32 %s352, %s356
          %s358 = smul.addr %s357, 128
          %s359 = scalar_lea.hbm %s0, %s358
          %s360 = sshll.u32 %s351, 4
          %s361 = int_to_ptr.vmem [resolvable:$true] %s360
          %366 = dma.hbm_to_vmem [thread:$0]  %s359, 256, %s361, %s348, 128, 128, 8
        $region36: #{dense_block_pallas.5} parent=31 // pred_fallthru
          _
        // Predicated region
        $region37: #{dense_block_pallas.5} parent=31 // pred_check
          %p367 = pneg %p99
        $region38: #{dense_block_pallas.5} parent=31 // pred_check_branch
          %369 = sbr.rel (%p367) target = $region40
        $region39: #{dense_block_pallas.5} parent=31 // pred_region
          %s370 = sand.u32 %s29, 1
          %s371 = scalar_lea.sflag [#allocation6], %s370
          %s372 = sand.u32 %s89, 1
          %s373 = smul.addr %s372, 8
          %s374 = scalar_lea.vmem [#allocation5], %s373
          %s375 = smul.u32 %s37, 2
          %s376 = ssub.s32 %s375, 1
          %p377 = scmp.gt.s32.totalorder %s376, 0
          %s378 = scalar_select %p377, %s376, 0
          %s380 = ssub.s32 128, 128
          %381 = vsyncadd %s371, %s380
          %s382 = smul.addr %s36, 2
          %s383 = sadd.s32 %s378, %s382
          %s384 = smul.addr %s383, 128
          %s385 = scalar_lea.hbm %s1, %s384
          %s387 = sshll.u32 %s374, 4
          %s388 = int_to_ptr.vmem [resolvable:$true] %s387
          %390 = dma.hbm_to_vmem [thread:$0]  %s385, 128, %s388, %s371
        $region40: #{dense_block_pallas.5} parent=31 // pred_fallthru
          _
        // Predicated region
        $region41: #{dense_block_pallas.5} parent=31 // pred_check
          %p391 = pneg %p135
        $region42: #{dense_block_pallas.5} parent=31 // pred_check_branch
          %393 = sbr.rel (%p391) target = $region44
        $region43: #{dense_block_pallas.5} parent=31 // pred_region
          %s394 = sand.u32 %s29, 1
          %s395 = scalar_lea.sflag [#allocation6], %s394
          %s396 = sand.u32 %s125, 1
          %s397 = smul.addr %s396, 8
          %s398 = scalar_lea.vmem [#allocation7], %s397
          %s399 = sadd.s32 %s37, 1
          %s400 = smul.u32 %s399, 2
          %p401 = scmp.lt.s32.totalorder %s400, 1
          %s402 = scalar_select %p401, %s400, 1
          %s404 = ssub.s32 128, 128
          %405 = vsyncadd %s395, %s404
          %s406 = smul.addr %s36, 2
          %s407 = sadd.s32 %s402, %s406
          %s408 = smul.addr %s407, 128
          %s409 = scalar_lea.hbm %s2, %s408
          %s411 = sshll.u32 %s398, 4
          %s412 = int_to_ptr.vmem [resolvable:$true] %s411
          %414 = dma.hbm_to_vmem [thread:$0]  %s409, 128, %s412, %s395
        $region44: #{dense_block_pallas.5} parent=31 // pred_fallthru
          _
      $region32: #{dense_block_pallas.5} parent=5 // pred_fallthru
        _
      %p415 = scmp.le.s32.totalorder 1, %s29
      %p416 = scmp.lt.s32.totalorder %s29, 3
      %p417 = pnand %p415, %p416
      %p418 = pneg %p417
      // Predicated region
      $region45: #{dense_block_pallas.5} parent=5 // pred_check
        _
      $region46: #{dense_block_pallas.5} parent=5 // pred_check_branch
        %420 = sbr.rel (%p417) target = $region48
      $region47: #{dense_block_pallas.5} parent=5 // pred_region
        %s421 = ssub.s32 %s29, 1
        %s422 = sand.u32 %s56, 1
        %s423 = scalar_lea.sflag [#allocation3], %s422
        %s424 = sand.u32 %s56, 1
        %s425 = smul.addr %s424, 16
        %s426 = scalar_lea.vmem [#allocation2], %s425
        // Predicated region
        $region49: #{dense_block_pallas.5} parent=47 // pred_check
          %p427 = pneg %p69
        $region50: #{dense_block_pallas.5} parent=47 // pred_check_branch
          %429 = sbr.rel (%p427) target = $region52
        $region51: #{dense_block_pallas.5} parent=47 // pred_region
          %430 = dma.done %s423, 256
        $region52: #{dense_block_pallas.5} parent=47 // pred_fallthru
          _
        %s431 = sand.u32 %s34, 1
        %s432 = scalar_lea.sflag [#allocation6], %s431
        %s433 = sand.u32 %s92, 1
        %s434 = smul.addr %s433, 8
        %s435 = scalar_lea.vmem [#allocation5], %s434
        // Predicated region
        $region53: #{dense_block_pallas.5} parent=47 // pred_check
          %p436 = pneg %p105
        $region54: #{dense_block_pallas.5} parent=47 // pred_check_branch
          %438 = sbr.rel (%p436) target = $region56
        $region55: #{dense_block_pallas.5} parent=47 // pred_region
          %439 = dma.done %s432, 128
        $region56: #{dense_block_pallas.5} parent=47 // pred_fallthru
          _
        %s440 = sand.u32 %s34, 1
        %s441 = scalar_lea.sflag [#allocation6], %s440
        %s442 = sand.u32 %s128, 1
        %s443 = smul.addr %s442, 8
        %s444 = scalar_lea.vmem [#allocation7], %s443
        // Predicated region
        $region57: #{dense_block_pallas.5} parent=47 // pred_check
          %p445 = pneg %p141
        $region58: #{dense_block_pallas.5} parent=47 // pred_check_branch
          %447 = sbr.rel (%p445) target = $region60
        $region59: #{dense_block_pallas.5} parent=47 // pred_region
          %448 = dma.done %s441, 128
        $region60: #{dense_block_pallas.5} parent=47 // pred_fallthru
          _
        // Predicated region
        $region61: #{dense_block_pallas.5} parent=47 // pred_check
          %p449 = pneg %p162
        $region62: #{dense_block_pallas.5} parent=47 // pred_check_branch
          %451 = sbr.rel (%p449) target = $region64
        $region63: #{dense_block_pallas.5} parent=47 // pred_region
          %452 = dma.done [#allocation9], 16
        $region64: #{dense_block_pallas.5} parent=47 // pred_fallthru
          _
        // Predicated region
        $region65: #{dense_block_pallas.5} parent=47 // pred_check
          %p453 = pneg %p183
        $region66: #{dense_block_pallas.5} parent=47 // pred_check_branch
          %455 = sbr.rel (%p453) target = $region68
        $region67: #{dense_block_pallas.5} parent=47 // pred_region
          %456 = dma.done [#allocation9], 16
        $region68: #{dense_block_pallas.5} parent=47 // pred_fallthru
          _
        // Predicated region
        $region69: #{dense_block_pallas.5} parent=47 // pred_check
          %p457 = pneg %p204
        $region70: #{dense_block_pallas.5} parent=47 // pred_check_branch
          %459 = sbr.rel (%p457) target = $region72
        $region71: #{dense_block_pallas.5} parent=47 // pred_region
          %460 = dma.done [#allocation12], 3072
        $region72: #{dense_block_pallas.5} parent=47 // pred_fallthru
          _
        // Predicated region
        $region73: #{dense_block_pallas.5} parent=47 // pred_check
          %p461 = pneg %p225
        $region74: #{dense_block_pallas.5} parent=47 // pred_check_branch
          %463 = sbr.rel (%p461) target = $region76
        $region75: #{dense_block_pallas.5} parent=47 // pred_region
          %464 = dma.done [#allocation12], 16
        $region76: #{dense_block_pallas.5} parent=47 // pred_fallthru
          _
        %s465 = sand.u32 %s56, 1
        %s466 = scalar_lea.sflag [#allocation3], %s465
        %s467 = sand.u32 %s56, 1
        %s468 = smul.addr %s467, 16
        %s469 = scalar_lea.vmem [#allocation2], %s468
        %p470 = pneg %p69
        %p471 = pneg %p66
        %s472 = sand.u32 %s34, 1
        %s473 = scalar_lea.sflag [#allocation6], %s472
        %s474 = sand.u32 %s92, 1
        %s475 = smul.addr %s474, 8
        %s476 = scalar_lea.vmem [#allocation5], %s475
        %p477 = pneg %p105
        %p478 = pneg %p102
        %s479 = sand.u32 %s34, 1
        %s480 = scalar_lea.sflag [#allocation6], %s479
        %s481 = sand.u32 %s128, 1
        %s482 = smul.addr %s481, 8
        %s483 = scalar_lea.vmem [#allocation7], %s482
        %p484 = pneg %p141
        %p485 = pneg %p138
        %p486 = pneg %p162
        %p487 = pneg %p159
        %p488 = pneg %p183
        %p489 = pneg %p180
        %p490 = pneg %p204
        %p491 = pneg %p201
        %p492 = pneg %p225
        %p493 = pneg %p222
        %p494 = pneg %p253
        %p495 = pneg %p250
        %s496 = sand.u32 %s240, 1
        %s497 = scalar_lea.sflag [#allocation4], %s496
        %s498 = sand.u32 %s240, 1
        %s499 = smul.addr %s498, 16
        %s500 = scalar_lea.vmem [#allocation14], %s499
        %p501 = pneg %p279
        %p502 = pneg %p276
        %s503 = sand.u32 %s266, 1
        %s504 = scalar_lea.sflag [#allocation16], %s503
        %s505 = sand.u32 %s266, 1
        %s506 = smul.addr %s505, 2
        %s507 = scalar_lea.vmem [#allocation15], %s506
        %s508 = smul.u32 2, %s39
        %s509 = smul.u32 %s39, 2
        %s510 = ssub.s32 %s509, 1
        %p511 = scmp.gt.s32.totalorder %s510, 0
        %s512 = scalar_select %p511, %s510, 0
        %s513 = sadd.s32 %s39, 1
        %s514 = smul.u32 %s513, 2
        %p515 = scmp.lt.s32.totalorder %s514, 1
        %s516 = scalar_select %p515, %s514, 1
        %s517 = smul.u32 2, %s39
        %v519 = vld [vmem:[#allocation8] sm:$0x1]
        %v520 = vld [vmem:[#allocation10] sm:$0x1]
        %v521 = vld [vmem:[%s426] sm:$0xff]
        %v522 = vld [vmem:[%s426 + $0x8] sm:$0xff]
        %v524 = vlaneseq
        %v525 = vshrl.u32 %v524, 7
        %v526 = vsub.s32 0, %v525
        %v527 = vrot.slane %v519, %v526
        %v529 = vmul.f32 %v521, %v527
        %v530 = vmul.f32 %v522, %v527
        %v532 = vlaneseq
        %v533 = vshrl.u32 %v532, 7
        %v534 = vsub.s32 0, %v533
        %v535 = vrot.slane %v520, %v534
        %v537 = vadd.f32 %v529, %v535
        %v538 = vadd.f32 %v530, %v535
        %v539 = vmul.f32 %v537, 0.5
        %v540 = vmul.f32 %v538, 0.5
        %v541 = vmul.f32 %v537, 0.70710677
        %v542 = vmul.f32 %v538, 0.70710677
        %v543 = verf.f32.pop %v541
        %v544 = verf.f32.pop %v542
        %v545 = vadd.f32 %v543, 1.0
        %v546 = vadd.f32 %v544, 1.0
        %v547 = vmul.f32 %v539, %v545
        %v548 = vmul.f32 %v540, %v546
        %p549 = scmp.eq.s32.totalorder %s39, 0
        %v550 = vld [vmem:[%s435] sm:$0xff]
        %v551 = vmul.f32 %v550, %v527
        %v552 = vadd.f32 %v551, %v535
        %v553 = vmul.f32 %v552, 0.5
        %v554 = vmul.f32 %v552, 0.70710677
        %v555 = verf.f32.pop %v554
        %v556 = vadd.f32 %v555, 1.0
        %v557 = vmul.f32 %v553, %v556
        %s558 = scalar_select %p549, 1, 0
        %v559 = vstv %s558
        %vm560 = vcmp.eq.s32.totalorder %v559, 1
        %v561 = vsel %vm560, 0.0, %v557
        %v562 = vld [vmem:[%s444] sm:$0xff]
        %v563 = vmul.f32 %v562, %v519
        %v564 = vadd.f32 %v563, %v520
        %v565 = vmul.f32 %v564, 0.5
        %v566 = vmul.f32 %v564, 0.70710677
        %v567 = verf.f32.pop %v566
        %v568 = vadd.f32 %v567, 1.0
        %v569 = vmul.f32 %v565, %v568
        %v570 = vsel %vm560, 0.0, %v569
        %v571 = vlaneseq
        %v572 = vshrl.u32 %v571, 7
        %v573 = vadd.s32 %v572, 8
        %vm574 = vcmp.eq.s32.totalorder %v572, 0
        %vm575 = vcmp.eq.s32.totalorder %v573, 0
        %v576 = vrot.slane %v547, 7
        %v577 = vrot.slane %v548, 7
        %vm578 = vcmp.lt.s32.totalorder %v572, 1
        %v579 = vsel %vm578, %v576, %v577
        %v580 = vsel %vm578, %v577, %v576
        %v581 = vsel %vm574, 1, 0
        %v582 = vsel %vm575, 1, 0
        %vm583 = vcmp.eq.s32.totalorder %v581, 1
        %vm584 = vcmp.eq.s32.totalorder %v582, 1
        %v585 = vlaneseq
        %v586 = vshrl.u32 %v585, 7
        %v587 = vsub.s32 7, %v586
        %v588 = vrot.slane %v561, %v587
        %v589 = vsel %vm583, %v588, %v580
        %v590 = vsel %vm584, %v588, %v579
        %vm591 = vcmp.eq.s32.totalorder %v572, 15
        %vm592 = vcmp.eq.s32.totalorder %v573, 15
        %v593 = vrot.slane %v547, 1
        %v594 = vrot.slane %v548, 1
        %vm595 = vcmp.lt.s32.totalorder %v572, 7
        %v596 = vsel %vm595, %v593, %v594
        %v597 = vsel %vm595, %v594, %v593
        %v598 = vsel %vm591, 1, 0
        %v599 = vsel %vm592, 1, 0
        %vm600 = vcmp.eq.s32.totalorder %v598, 1
        %vm601 = vcmp.eq.s32.totalorder %v599, 1
        %v602 = vlaneseq
        %v603 = vshrl.u32 %v602, 7
        %v604 = vsub.s32 0, %v603
        %v605 = vrot.slane %v570, %v604
        %v606 = vsel %vm600, %v605, %v596
        %v607 = vsel %vm601, %v605, %v597
        %v608 = vpack.c.bf16 %v590, %v589
        %v609 = vld [vmem:[#allocation11] sm:$0xf]
        %v610 = vld [vmem:[#allocation11 + $0x4] sm:$0xf]
        %v611 = vld [vmem:[#allocation11 + $0x8] sm:$0xf]
        %v612 = vld [vmem:[#allocation11 + $0xc] sm:$0xf]
        %v613 = vld [vmem:[#allocation11 + $0x10] sm:$0xf]
        %v614 = vld [vmem:[#allocation11 + $0x14] sm:$0xf]
        %v615 = vld [vmem:[#allocation11 + $0x18] sm:$0xf]
        %v616 = vld [vmem:[#allocation11 + $0x1c] sm:$0xf]
        %v617 = vld [vmem:[#allocation11 + $0x20] sm:$0xf]
        %v618 = vld [vmem:[#allocation11 + $0x24] sm:$0xf]
        %v619 = vld [vmem:[#allocation11 + $0x28] sm:$0xf]
        %v620 = vld [vmem:[#allocation11 + $0x2c] sm:$0xf]
        %v621 = vld [vmem:[#allocation11 + $0x30] sm:$0xf]
        %v622 = vld [vmem:[#allocation11 + $0x34] sm:$0xf]
        %v623 = vld [vmem:[#allocation11 + $0x38] sm:$0xf]
        %v624 = vld [vmem:[#allocation11 + $0x3c] sm:$0xf]
        %v625 = vpack.c.bf16 %v548, %v547
        %s626 = scalar_lea.vmem [#allocation11], 64
        %v627 = vld [vmem:[%s626] sm:$0xf]
        %v628 = vld [vmem:[%s626 + $0x4] sm:$0xf]
        %v629 = vld [vmem:[%s626 + $0x8] sm:$0xf]
        %v630 = vld [vmem:[%s626 + $0xc] sm:$0xf]
        %v631 = vld [vmem:[%s626 + $0x10] sm:$0xf]
        %v632 = vld [vmem:[%s626 + $0x14] sm:$0xf]
        %v633 = vld [vmem:[%s626 + $0x18] sm:$0xf]
        %v634 = vld [vmem:[%s626 + $0x1c] sm:$0xf]
        %v635 = vld [vmem:[%s626 + $0x20] sm:$0xf]
        %v636 = vld [vmem:[%s626 + $0x24] sm:$0xf]
        %v637 = vld [vmem:[%s626 + $0x28] sm:$0xf]
        %v638 = vld [vmem:[%s626 + $0x2c] sm:$0xf]
        %v639 = vld [vmem:[%s626 + $0x30] sm:$0xf]
        %v640 = vld [vmem:[%s626 + $0x34] sm:$0xf]
        %v641 = vld [vmem:[%s626 + $0x38] sm:$0xf]
        %v642 = vld [vmem:[%s626 + $0x3c] sm:$0xf]
        %v659 = vunpack.c.l.b16 %v627
        %v660 = vunpack.c.l.b16 %v628
        %v661 = vunpack.c.l.b16 %v629
        %v662 = vunpack.c.l.b16 %v630
        %v663 = vunpack.c.l.b16 %v631
        %v664 = vunpack.c.l.b16 %v632
        %v665 = vunpack.c.l.b16 %v633
        %v666 = vunpack.c.l.b16 %v634
        %v667 = vunpack.c.l.b16 %v635
        %v668 = vunpack.c.l.b16 %v636
        %v669 = vunpack.c.l.b16 %v637
        %v670 = vunpack.c.l.b16 %v638
        %v671 = vunpack.c.l.b16 %v639
        %v672 = vunpack.c.l.b16 %v640
        %v673 = vunpack.c.l.b16 %v641
        %v674 = vunpack.c.l.b16 %v642
        %v675 = vpack.c.b16 %v660, %v659
        %v676 = vpack.c.b16 %v662, %v661
        %v677 = vpack.c.b16 %v664, %v663
        %v678 = vpack.c.b16 %v666, %v665
        %v679 = vpack.c.b16 %v668, %v667
        %v680 = vpack.c.b16 %v670, %v669
        %v681 = vpack.c.b16 %v672, %v671
        %v682 = vpack.c.b16 %v674, %v673
        %691 = vmatprep.subr.bf16.mxu0 0
        %692 = vmatpush1.bf16.msra.mxu0 %v675
        %693 = vmatprep.subr.bf16.mxu0 0
        %694 = vmatpush1.bf16.msra.mxu0 %v676
        %695 = vmatprep.subr.bf16.mxu0 0
        %696 = vmatpush1.bf16.msra.mxu0 %v677
        %697 = vmatprep.subr.bf16.mxu0 0
        %698 = vmatpush1.bf16.msra.mxu0 %v678
        %699 = vmatprep.subr.bf16.mxu0 0
        %700 = vmatpush1.bf16.msra.mxu0 %v679
        %701 = vmatprep.subr.bf16.mxu0 0
        %702 = vmatpush1.bf16.msra.mxu0 %v680
        %703 = vmatprep.subr.bf16.mxu0 0
        %704 = vmatpush1.bf16.msra.mxu0 %v681
        %705 = vmatprep.subr.bf16.mxu0 0
        %706 = vmatpush1.bf16.msra.mxu0 %v682
        %707 = vmatprep.subr.bf16.mxu0 0
        %708 = vmatpush1.bf16.msra.mxu0 0
        %709 = vmatprep.subr.bf16.mxu0 0
        %710 = vmatpush1.bf16.msra.mxu0 0
        %711 = vmatprep.subr.bf16.mxu0 0
        %712 = vmatpush1.bf16.msra.mxu0 0
        %713 = vmatprep.subr.bf16.mxu0 0
        %714 = vmatpush1.bf16.msra.mxu0 0
        %715 = vmatprep.subr.bf16.mxu0 0
        %716 = vmatpush1.bf16.msra.mxu0 0
        %717 = vmatprep.subr.bf16.mxu0 0
        %718 = vmatpush1.bf16.msra.mxu0 0
        %719 = vmatprep.subr.bf16.mxu0 0
        %720 = vmatpush1.bf16.msra.mxu0 0
        %721 = vmatprep.subr.bf16.mxu0 0
        %722 = vmatpush1.bf16.msra.mxu0 0
        %723 = vmatprep.mubr.bf16.mxu0 0
        %724 = vmatmul.mubr.bf16.gmra.mrb[0].mxu0 %v625
        %v725 = vpop.f32.mrb[0].mxu0
        %v726 = vadd.f32 0.0, %v725
        %v727 = vpop.f32.mrb[0].mxu0
        %v728 = vpop.f32.mrb[0].mxu0
        %v729 = vadd.f32 0.0, %v728
        %v730 = vpop.f32.mrb[0].mxu0
        %731 = vdwg.mxu0
        %v748 = vunpack.c.l.b16 %v609
        %v749 = vunpack.c.l.b16 %v610
        %v750 = vunpack.c.l.b16 %v611
        %v751 = vunpack.c.l.b16 %v612
        %v752 = vunpack.c.l.b16 %v613
        %v753 = vunpack.c.l.b16 %v614
        %v754 = vunpack.c.l.b16 %v615
        %v755 = vunpack.c.l.b16 %v616
        %v756 = vunpack.c.l.b16 %v617
        %v757 = vunpack.c.l.b16 %v618
        %v758 = vunpack.c.l.b16 %v619
        %v759 = vunpack.c.l.b16 %v620
        %v760 = vunpack.c.l.b16 %v621
        %v761 = vunpack.c.l.b16 %v622
        %v762 = vunpack.c.l.b16 %v623
        %v763 = vunpack.c.l.b16 %v624
        %v764 = vpack.c.b16 %v749, %v748
        %v765 = vpack.c.b16 %v751, %v750
        %v766 = vpack.c.b16 %v753, %v752
        %v767 = vpack.c.b16 %v755, %v754
        %v768 = vpack.c.b16 %v757, %v756
        %v769 = vpack.c.b16 %v759, %v758
        %v770 = vpack.c.b16 %v761, %v760
        %v771 = vpack.c.b16 %v763, %v762
        %780 = vmatprep.subr.bf16.mxu0 0
        %781 = vmatpush1.bf16.msra.mxu0 %v764
        %782 = vmatprep.subr.bf16.mxu0 0
        %783 = vmatpush1.bf16.msra.mxu0 %v765
        %784 = vmatprep.subr.bf16.mxu0 0
        %785 = vmatpush1.bf16.msra.mxu0 %v766
        %786 = vmatprep.subr.bf16.mxu0 0
        %787 = vmatpush1.bf16.msra.mxu0 %v767
        %788 = vmatprep.subr.bf16.mxu0 0
        %789 = vmatpush1.bf16.msra.mxu0 %v768
        %790 = vmatprep.subr.bf16.mxu0 0
        %791 = vmatpush1.bf16.msra.mxu0 %v769
        %792 = vmatprep.subr.bf16.mxu0 0
        %793 = vmatpush1.bf16.msra.mxu0 %v770
        %794 = vmatprep.subr.bf16.mxu0 0
        %795 = vmatpush1.bf16.msra.mxu0 %v771
        %796 = vmatprep.subr.bf16.mxu0 0
        %797 = vmatpush1.bf16.msra.mxu0 0
        %798 = vmatprep.subr.bf16.mxu0 0
        %799 = vmatpush1.bf16.msra.mxu0 0
        %800 = vmatprep.subr.bf16.mxu0 0
        %801 = vmatpush1.bf16.msra.mxu0 0
        %802 = vmatprep.subr.bf16.mxu0 0
        %803 = vmatpush1.bf16.msra.mxu0 0
        %804 = vmatprep.subr.bf16.mxu0 0
        %805 = vmatpush1.bf16.msra.mxu0 0
        %806 = vmatprep.subr.bf16.mxu0 0
        %807 = vmatpush1.bf16.msra.mxu0 0
        %808 = vmatprep.subr.bf16.mxu0 0
        %809 = vmatpush1.bf16.msra.mxu0 0
        %810 = vmatprep.subr.bf16.mxu0 0
        %811 = vmatpush1.bf16.msra.mxu0 0
        %812 = vmatprep.mubr.bf16.mxu0 0
        %813 = vmatmul.mubr.bf16.gmra.mrb[0].mxu0 %v608
        %v814 = vpop.f32.mrb[0].mxu0
        %v815 = vadd.f32 %v726, %v814
        %v816 = vpop.f32.mrb[0].mxu0
        %v817 = vpop.f32.mrb[0].mxu0
        %v818 = vadd.f32 %v729, %v817
        %v819 = vpop.f32.mrb[0].mxu0
        %820 = vdwg.mxu0
        %v821 = vpack.c.bf16 %v607, %v606
        %s822 = scalar_lea.vmem [#allocation11], 128
        %v823 = vld [vmem:[%s822] sm:$0xf]
        %v824 = vld [vmem:[%s822 + $0x4] sm:$0xf]
        %v825 = vld [vmem:[%s822 + $0x8] sm:$0xf]
        %v826 = vld [vmem:[%s822 + $0xc] sm:$0xf]
        %v827 = vld [vmem:[%s822 + $0x10] sm:$0xf]
        %v828 = vld [vmem:[%s822 + $0x14] sm:$0xf]
        %v829 = vld [vmem:[%s822 + $0x18] sm:$0xf]
        %v830 = vld [vmem:[%s822 + $0x1c] sm:$0xf]
        %v831 = vld [vmem:[%s822 + $0x20] sm:$0xf]
        %v832 = vld [vmem:[%s822 + $0x24] sm:$0xf]
        %v833 = vld [vmem:[%s822 + $0x28] sm:$0xf]
        %v834 = vld [vmem:[%s822 + $0x2c] sm:$0xf]
        %v835 = vld [vmem:[%s822 + $0x30] sm:$0xf]
        %v836 = vld [vmem:[%s822 + $0x34] sm:$0xf]
        %v837 = vld [vmem:[%s822 + $0x38] sm:$0xf]
        %v838 = vld [vmem:[%s822 + $0x3c] sm:$0xf]
        %v855 = vunpack.c.l.b16 %v823
        %v856 = vunpack.c.l.b16 %v824
        %v857 = vunpack.c.l.b16 %v825
        %v858 = vunpack.c.l.b16 %v826
        %v859 = vunpack.c.l.b16 %v827
        %v860 = vunpack.c.l.b16 %v828
        %v861 = vunpack.c.l.b16 %v829
        %v862 = vunpack.c.l.b16 %v830
        %v863 = vunpack.c.l.b16 %v831
        %v864 = vunpack.c.l.b16 %v832
        %v865 = vunpack.c.l.b16 %v833
        %v866 = vunpack.c.l.b16 %v834
        %v867 = vunpack.c.l.b16 %v835
        %v868 = vunpack.c.l.b16 %v836
        %v869 = vunpack.c.l.b16 %v837
        %v870 = vunpack.c.l.b16 %v838
        %v871 = vpack.c.b16 %v856, %v855
        %v872 = vpack.c.b16 %v858, %v857
        %v873 = vpack.c.b16 %v860, %v859
        %v874 = vpack.c.b16 %v862, %v861
        %v875 = vpack.c.b16 %v864, %v863
        %v876 = vpack.c.b16 %v866, %v865
        %v877 = vpack.c.b16 %v868, %v867
        %v878 = vpack.c.b16 %v870, %v869
        %887 = vmatprep.subr.bf16.mxu0 0
        %888 = vmatpush1.bf16.msra.mxu0 %v871
        %889 = vmatprep.subr.bf16.mxu0 0
        %890 = vmatpush1.bf16.msra.mxu0 %v872
        %891 = vmatprep.subr.bf16.mxu0 0
        %892 = vmatpush1.bf16.msra.mxu0 %v873
        %893 = vmatprep.subr.bf16.mxu0 0
        %894 = vmatpush1.bf16.msra.mxu0 %v874
        %895 = vmatprep.subr.bf16.mxu0 0
        %896 = vmatpush1.bf16.msra.mxu0 %v875
        %897 = vmatprep.subr.bf16.mxu0 0
        %898 = vmatpush1.bf16.msra.mxu0 %v876
        %899 = vmatprep.subr.bf16.mxu0 0
        %900 = vmatpush1.bf16.msra.mxu0 %v877
        %901 = vmatprep.subr.bf16.mxu0 0
        %902 = vmatpush1.bf16.msra.mxu0 %v878
        %903 = vmatprep.subr.bf16.mxu0 0
        %904 = vmatpush1.bf16.msra.mxu0 0
        %905 = vmatprep.subr.bf16.mxu0 0
        %906 = vmatpush1.bf16.msra.mxu0 0
        %907 = vmatprep.subr.bf16.mxu0 0
        %908 = vmatpush1.bf16.msra.mxu0 0
        %909 = vmatprep.subr.bf16.mxu0 0
        %910 = vmatpush1.bf16.msra.mxu0 0
        %911 = vmatprep.subr.bf16.mxu0 0
        %912 = vmatpush1.bf16.msra.mxu0 0
        %913 = vmatprep.subr.bf16.mxu0 0
        %914 = vmatpush1.bf16.msra.mxu0 0
        %915 = vmatprep.subr.bf16.mxu0 0
        %916 = vmatpush1.bf16.msra.mxu0 0
        %917 = vmatprep.subr.bf16.mxu0 0
        %918 = vmatpush1.bf16.msra.mxu0 0
        %919 = vmatprep.mubr.bf16.mxu0 0
        %920 = vmatmul.mubr.bf16.gmra.mrb[0].mxu0 %v821
        %v921 = vpop.f32.mrb[0].mxu0
        %v922 = vadd.f32 0.0, %v921
        %v923 = vpop.f32.mrb[0].mxu0
        %v924 = vpop.f32.mrb[0].mxu0
        %v925 = vadd.f32 0.0, %v924
        %v926 = vpop.f32.mrb[0].mxu0
        %927 = vdwg.mxu0
        %v928 = vadd.f32 %v815, %v922
        %v929 = vadd.f32 %v818, %v925
        %v930 = vld [vmem:[#allocation13] sm:$0x1]
        %v932 = vlaneseq
        %v933 = vshrl.u32 %v932, 7
        %v934 = vsub.s32 0, %v933
        %v935 = vrot.slane %v930, %v934
        %v937 = vadd.f32 %v928, %v935
        %v938 = vadd.f32 %v929, %v935
        %v939 = vadd.f32 %v937, %v521
        %v940 = vadd.f32 %v938, %v522
        %941 = vst [vmem:[%s500] sm:$0xff] %v939
        %942 = vst [vmem:[%s500 + $0x8] sm:$0xff] %v940
        // Predicated region
        $region77: #{dense_block_pallas.5} parent=47 // pred_check
          %p943 = pneg %p549
        $region78: #{dense_block_pallas.5} parent=47 // pred_check_branch
          %945 = sbr.rel (%p943) target = $region80
        $region79: #{dense_block_pallas.5} parent=47 // pred_region
          %946 = vst [vmem:[%s507] sm:$0x3] 0.0
        $region80: #{dense_block_pallas.5} parent=47 // pred_fallthru
          _
        %v947 = vadd.f32 %v939, %v940
        %v948 = vrot.slane %v947, 4
        %v949 = vadd.f32 %v947, %v948
        %v950 = vrot.slane %v949, 2
        %v951 = vadd.f32 %v949, %v950
        %v952 = vrot.slane %v951, 1
        %v953 = vadd.f32 %v951, %v952
        %v954 = vmul.f32 %v939, %v939
        %v955 = vmul.f32 %v940, %v940
        %v956 = vadd.f32 %v954, %v955
        %v957 = vrot.slane %v956, 4
        %v958 = vadd.f32 %v956, %v957
        %v959 = vrot.slane %v958, 2
        %v960 = vadd.f32 %v958, %v959
        %v961 = vrot.slane %v960, 1
        %v962 = vadd.f32 %v960, %v961
        %v963 = vld [vmem:[%s507] sm:$0x3]
        %vm964 = vcmask 1040384
        %v965 = vsel %vm964, %v953, %v962
        %v966 = vadd.f32 %v963, %v965
        %967 = vst [vmem:[%s507] sm:$0x3] %v966
        %s968 = sand.u32 %s240, 1
        %s969 = scalar_lea.sflag [#allocation4], %s968
        %s970 = sand.u32 %s240, 1
        %s971 = smul.addr %s970, 16
        %s972 = scalar_lea.vmem [#allocation14], %s971
        %s973 = sand.u32 %s266, 1
        %s974 = scalar_lea.sflag [#allocation16], %s973
        %s975 = sand.u32 %s266, 1
        %s976 = smul.addr %s975, 2
        %s977 = scalar_lea.vmem [#allocation15], %s976
        // Predicated region
        $region81: #{dense_block_pallas.5} parent=47 // pred_check
          %p978 = pneg %p250
        $region82: #{dense_block_pallas.5} parent=47 // pred_check_branch
          %980 = sbr.rel (%p978) target = $region84
        $region83: #{dense_block_pallas.5} parent=47 // pred_region
          %s981 = smul.u32 2, %s39
          %s983 = ssub.s32 256, 256
          %984 = vsyncadd %s969, %s983
          %s985 = smul.addr %s38, 2
          %s986 = sadd.s32 %s981, %s985
          %s987 = smul.addr %s986, 128
          %s988 = scalar_lea.hbm %s7, %s987
          %s989 = sshll.u32 %s972, 4
          %s990 = int_to_ptr.vmem [resolvable:$true] %s989
          %995 = dma.vmem_to_hbm [thread:$0]  %s990, 256, %s988, %s969, 128, 128, 8
        $region84: #{dense_block_pallas.5} parent=47 // pred_fallthru
          _
        // Predicated region
        $region85: #{dense_block_pallas.5} parent=47 // pred_check
          %p996 = pneg %p276
        $region86: #{dense_block_pallas.5} parent=47 // pred_check_branch
          %998 = sbr.rel (%p996) target = $region88
        $region87: #{dense_block_pallas.5} parent=47 // pred_region
          %s1000 = ssub.s32 32, 32
          %1001 = vsyncadd %s974, %s1000
          %s1002 = smul.addr %s38, 32
          %s1003 = scalar_lea.hbm %s8, %s1002
          %s1005 = sshll.u32 %s977, 4
          %s1006 = int_to_ptr.vmem [resolvable:$true] %s1005
          %1008 = dma.vmem_to_hbm [thread:$0]  %s1006, 32, %s1003, %s974
        $region88: #{dense_block_pallas.5} parent=47 // pred_fallthru
          _
      $region48: #{dense_block_pallas.5} parent=5 // pred_fallthru
        _
      %p1009 = scmp.le.s32.totalorder 2, %s29
      // Predicated region
      $region89: #{dense_block_pallas.5} parent=5 // pred_check
        %p1010 = pneg %p1009
      $region90: #{dense_block_pallas.5} parent=5 // pred_check_branch
        %1012 = sbr.rel (%p1010) target = $region92
      $region91: #{dense_block_pallas.5} parent=5 // pred_region
        %s1013 = ssub.s32 %s29, 2
        // Predicated region
        $region93: #{dense_block_pallas.5} parent=91 // pred_check
          %p1014 = pneg %p256
        $region94: #{dense_block_pallas.5} parent=91 // pred_check_branch
          %1016 = sbr.rel (%p1014) target = $region96
        $region95: #{dense_block_pallas.5} parent=91 // pred_region
          %s1017 = sand.u32 %s241, 1
          %s1018 = scalar_lea.sflag [#allocation4], %s1017
          %s1019 = sand.u32 %s241, 1
          %s1020 = smul.addr %s1019, 16
          %s1021 = scalar_lea.vmem [#allocation14], %s1020
          %1022 = dma.done %s1018, 256
        $region96: #{dense_block_pallas.5} parent=91 // pred_fallthru
          _
        // Predicated region
        $region97: #{dense_block_pallas.5} parent=91 // pred_check
          %p1023 = pneg %p282
        $region98: #{dense_block_pallas.5} parent=91 // pred_check_branch
          %1025 = sbr.rel (%p1023) target = $region100
        $region99: #{dense_block_pallas.5} parent=91 // pred_region
          %s1026 = sand.u32 %s267, 1
          %s1027 = scalar_lea.sflag [#allocation16], %s1026
          %s1028 = sand.u32 %s267, 1
          %s1029 = smul.addr %s1028, 2
          %s1030 = scalar_lea.vmem [#allocation15], %s1029
          %1031 = dma.done %s1027, 32
        $region100: #{dense_block_pallas.5} parent=91 // pred_fallthru
          _
      $region92: #{dense_block_pallas.5} parent=5 // pred_fallthru
        _
    $region6: #{dense_block_pallas.5} parent=1 // loop_footer
      %s33 = sadd.s32 1, %s29
    $region7: #{dense_block_pallas.5} parent=1 // loop_footer_branch
      %28 = sbr.rel target = $region3
    $region8: #{dense_block_pallas.5} parent=1 // loop_exit
      _
    %1032 = vsyncpa [#allocation3], 1
    %s1033 = scalar_lea.sflag [#allocation3], 1
    %1034 = vsyncpa %s1033, 1
    %1035 = vsyncpa [#allocation6], 1
    %s1036 = scalar_lea.sflag [#allocation6], 1
    %1037 = vsyncpa %s1036, 1
    %1038 = vsyncpa [#allocation9], 1
    %1039 = vsyncpa [#allocation12], 1
    %1040 = vsyncpa [#allocation4], 1
    %s1041 = scalar_lea.sflag [#allocation4], 1
    %1042 = vsyncpa %s1041, 1
    %1043 = vsyncpa [#allocation16], 1
    %s1044 = scalar_lea.sflag [#allocation16], 1
    %1045 = vsyncpa %s1044, 1

</llo_original>
